<compile_context>
chip_gen: v7x
topology: tpu7x:2x2x1
jax: 0.10.0
libtpu: 0.0.40
codegen_flags: <defaults>
</compile_context>

<pallas_src>
import math
import jax
import jax.numpy as jnp
from jax.experimental import pallas as pl
from jax.experimental.pallas import tpu as pltpu

# ----------------------------- config (small, consistent with the module) ----
B = 2          # batch
N = 8          # sequence length (grid positions)
D_MODEL = 32
H = 4
D_K = 16
D_V = 16
D_FF = 64
LN_EPS = 1e-5

SLAB_W = 64    # lane width of both parameter slabs = max(H*D_K, D_FF, D_MODEL)

# ---- weight slab row offsets (bf16, shape (W_ROWS, SLAB_W)) ------------------
RW_Q = 0                       # rows [0, 32)    : Wq * 1/sqrt(d_k)  (D_MODEL, H*D_K)
RW_K = D_MODEL                 # rows [32, 64)   : Wk                (D_MODEL, H*D_K)
RW_V = 2 * D_MODEL             # rows [64, 96)   : Wv                (D_MODEL, H*D_V)
RW_O = 3 * D_MODEL             # rows [96, 160)  : Wo                (H*D_V, D_MODEL) in cols [0,32)
RW_F1 = RW_O + H * D_V         # rows [160, 192) : W1                (D_MODEL, D_FF)
RW_F2 = RW_F1 + D_MODEL        # rows [192, 256) : W2                (D_FF, D_MODEL) in cols [0,32)
W_ROWS = RW_F2 + D_FF          # 256

# ---- bias / LayerNorm slab rows (f32, shape (B_ROWS, SLAB_W)) ----------------
ROW_BQ, ROW_BK, ROW_BV, ROW_BO = 0, 1, 2, 3
ROW_G1, ROW_BE1, ROW_BF1, ROW_BF2, ROW_G2, ROW_BE2 = 4, 5, 6, 7, 8, 9
B_ROWS = 10


def encoder_layer_kernel(seqs_ref, geo_ref, w_ref, b_ref, out_ref, o_scr):
    f32, bf16 = jnp.float32, jnp.bfloat16

    # flattened (B*N, D_MODEL) activation slabs
    queries = seqs_ref[0]
    keys    = seqs_ref[1]
    values  = seqs_ref[2]
    pos     = seqs_ref[3]

    qp = (queries + pos).astype(bf16)
    kp = (keys + pos).astype(bf16)
    vp = (values + pos).astype(bf16)          # v = values + pos (EncoderLayer.forward)

    def brow(r, w):                            # (1, w) lane-aligned bias/LN row view
        return b_ref[r:r + 1, 0:w]

    # ---- fused Q/K/V projections: one bf16 matmul per input ------------------
    # (1/sqrt(d_k) is folded into Wq/bq host-side)
    q_all = jnp.dot(qp, w_ref[RW_Q:RW_Q + D_MODEL, :],
                    preferred_element_type=f32) + brow(ROW_BQ, H * D_K)     # (B*N, H*D_K)
    k_all = jnp.dot(kp, w_ref[RW_K:RW_K + D_MODEL, :],
                    preferred_element_type=f32) + brow(ROW_BK, H * D_K)
    v_all = jnp.dot(vp, w_ref[RW_V:RW_V + D_MODEL, :],
                    preferred_element_type=f32) + brow(ROW_BV, H * D_V)

    q16 = q_all.astype(bf16)
    k16 = k_all.astype(bf16)
    v16 = v_all.astype(bf16)

    # ---- attention: only the (N,N) score/softmax/PV block lives in the loops --
    for hh in range(H):                                      # static unroll (H small)
        c0 = hh * D_K
        qh = q16[:, c0:c0 + D_K]                             # static 16-lane slices
        kh = k16[:, c0:c0 + D_K]
        vh = v16[:, hh * D_V:(hh + 1) * D_V]
        for b in range(B):                                   # attention is per batch element
            r0 = b * N
            qhb = qh[r0:r0 + N]                              # (N, D_K)
            khb = kh[r0:r0 + N]
            vhb = vh[r0:r0 + N]

            # logits = q @ k^T  (scale already folded into Wq/bq)
            logits = jax.lax.dot_general(
                qhb, khb, (((1,), (1,)), ((), ())),
                preferred_element_type=f32)                  # (N, N)

            # relative geometry bias + mask, read straight from the input ref
            # (leading-axis indexing of a ref is a free view; tiny log sits on EUP)
            geo_bh = geo_ref[b, hh]                          # (N, N)
            mask_b = geo_ref[b, H]                           # packed mask slice, (N, N)
            s = logits + jnp.log(jnp.maximum(geo_bh, 1e-6))
            s = jnp.where(mask_b > 0.0, -1e9, s)             # overwrite (matches reference)

            # exact softmax (no approx reciprocal)
            s = s - jnp.max(s, axis=-1, keepdims=True)
            p = jnp.exp(s)
            p = p / jnp.sum(p, axis=-1, keepdims=True)

            o = jnp.dot(p.astype(bf16), vhb,
                        preferred_element_type=f32)          # (N, D_V)
            # write this head/batch block at a static offset -> one fused Wo matmul later
            o_scr[r0:r0 + N, hh * D_V:(hh + 1) * D_V] = o

    # ---- single fused output projection over all heads ------------------------
    att = jnp.dot(o_scr[...].astype(bf16),
                  w_ref[RW_O:RW_O + H * D_V, 0:D_MODEL],
                  preferred_element_type=f32) + brow(ROW_BO, D_MODEL)       # (B*N, D_MODEL)

    # ---- residual + LayerNorm (EncoderLayer.lnorm); dropout = identity --------
    x = queries + att
    mu = jnp.mean(x, axis=-1, keepdims=True)
    var = jnp.mean((x - mu) * (x - mu), axis=-1, keepdims=True)
    x = (x - mu) * jax.lax.rsqrt(var + LN_EPS) * brow(ROW_G1, D_MODEL) + brow(ROW_BE1, D_MODEL)

    # ---- position-wise feed forward (residual + LayerNorm inside) -------------
    h1 = jnp.maximum(
        jnp.dot(x.astype(bf16), w_ref[RW_F1:RW_F1 + D_MODEL, :],
                preferred_element_type=f32) + brow(ROW_BF1, D_FF), 0.0)
    ff = jnp.dot(h1.astype(bf16), w_ref[RW_F2:RW_F2 + D_FF, 0:D_MODEL],
                 preferred_element_type=f32) + brow(ROW_BF2, D_MODEL)
    y = x + ff
    mu2 = jnp.mean(y, axis=-1, keepdims=True)
    var2 = jnp.mean((y - mu2) * (y - mu2), axis=-1, keepdims=True)
    out = (y - mu2) * jax.lax.rsqrt(var2 + LN_EPS) * brow(ROW_G2, D_MODEL) + brow(ROW_BE2, D_MODEL)

    out_ref[...] = out.astype(out_ref.dtype)


def encoder_layer(queries, keys, values, rel_geo, pos, mask, params):
    (wq, bq, wk, bk, wv, bv, wo, bo, g1, be1, w1, bf1, w2, bf2, g2, be2) = params

    # ---- host-side packing (layout plumbing only, a few KB) -------------------
    scale = 1.0 / math.sqrt(D_K)
    wq_s, bq_s = wq * scale, bq * scale            # fold 1/sqrt(d_k) into Wq/bq

    def pad_lanes(w):                              # (r, c) -> (r, SLAB_W)
        return jnp.pad(w, ((0, 0), (0, SLAB_W - w.shape[1])))

    # one bf16 weight slab, all blocks addressed by static row slices in the kernel
    w_slab = jnp.concatenate(
        [pad_lanes(wq_s), pad_lanes(wk), pad_lanes(wv),
         pad_lanes(wo), pad_lanes(w1), pad_lanes(w2)], axis=0).astype(jnp.bfloat16)
    assert w_slab.shape == (W_ROWS, SLAB_W)

    def row(v):
        v = v.reshape(-1)
        return jnp.pad(v, (0, SLAB_W - v.shape[0]))

    b_slab = jnp.stack([row(bq_s), row(bk), row(bv), row(bo),
                        row(g1), row(be1), row(bf1), row(bf2), row(g2), row(be2)])
    assert b_slab.shape == (B_ROWS, SLAB_W)

    # flatten batch+seq; pack q/k/v/pos into one DMA stream
    seqs = jnp.stack([queries.reshape(B * N, D_MODEL),
                      keys.reshape(B * N, D_MODEL),
                      values.reshape(B * N, D_MODEL),
                      pos.reshape(B * N, D_MODEL)])          # (4, B*N, D_MODEL)

    # carry the additive mask as an extra "head" slice of rel_geo
    geo_mask = jnp.concatenate(
        [rel_geo, jnp.broadcast_to(mask, (B, 1, N, N))], axis=1)  # (B, H+1, N, N)

    in_arrays = [seqs, geo_mask, w_slab, b_slab]              # 4 DMA streams

    def full_spec(a):                                         # whole array, single block
        nd = a.ndim
        return pl.BlockSpec(a.shape, lambda i, _nd=nd: (0,) * _nd)

    out = pl.pallas_call(
        encoder_layer_kernel,
        out_shape=jax.ShapeDtypeStruct((B * N, D_MODEL), jnp.float32),
        grid_spec=pltpu.PrefetchScalarGridSpec(
            num_scalar_prefetch=0,
            grid=(1,),                                        # single fused invocation
            in_specs=[full_spec(a) for a in in_arrays],
            out_specs=pl.BlockSpec((B * N, D_MODEL), lambda i: (0, 0)),
            scratch_shapes=[pltpu.VMEM((B * N, H * D_V), jnp.float32)],
        ),
        compiler_params=pltpu.CompilerParams(dimension_semantics=("arbitrary",)),
    )(*in_arrays)
    return out.reshape(B, N, D_MODEL)


# ----------------------------- pure-JAX reference (f32) -----------------------
def encoder_layer_ref(queries, keys, values, rel_geo, pos, mask, params):
    (wq, bq, wk, bk, wv, bv, wo, bo, g1, be1, w1, bf1, w2, bf2, g2, be2) = params
    qp, kp, vp = queries + pos, keys + pos, values + pos
    Q = qp @ wq + bq
    K = kp @ wk + bk
    V = vp @ wv + bv
    Q = Q.reshape(B, N, H, D_K).transpose(0, 2, 1, 3)
    K = K.reshape(B, N, H, D_K).transpose(0, 2, 1, 3)
    V = V.reshape(B, N, H, D_V).transpose(0, 2, 1, 3)
    logits = jnp.einsum('bhqd,bhkd->bhqk', Q, K) / math.sqrt(D_K)
    w_mn = jnp.log(jnp.maximum(rel_geo, 1e-6)) + logits
    w_mn = jnp.where(mask > 0.0, -1e9, w_mn)
    p = jax.nn.softmax(w_mn, axis=-1)
    att = jnp.einsum('bhqk,bhkd->bhqd', p, V).transpose(0, 2, 1, 3).reshape(B, N, H * D_V)
    att = att @ wo + bo

    def ln(x, g, b):
        mu = jnp.mean(x, axis=-1, keepdims=True)
        var = jnp.mean((x - mu) ** 2, axis=-1, keepdims=True)
        return (x - mu) * jax.lax.rsqrt(var + LN_EPS) * g + b

    att_ln = ln(queries + att, g1, be1)
    ff = jnp.maximum(att_ln @ w1 + bf1, 0.0) @ w2 + bf2
    return ln(att_ln + ff, g2, be2)


# ----------------------------- deterministic setup -----------------------------
def make_params(key):
    ks = jax.random.split(key, 10)

    def w(k, shape, fan_in):
        return jax.random.normal(k, shape, jnp.float32) / math.sqrt(fan_in)

    wq = w(ks[0], (D_MODEL, H * D_K), D_MODEL); bq = jnp.zeros((1, H * D_K), jnp.float32)
    wk = w(ks[1], (D_MODEL, H * D_K), D_MODEL); bk = jnp.zeros((1, H * D_K), jnp.float32)
    wv = w(ks[2], (D_MODEL, H * D_V), D_MODEL); bv = jnp.zeros((1, H * D_V), jnp.float32)
    wo = w(ks[3], (H * D_V, D_MODEL), H * D_V); bo = jnp.zeros((1, D_MODEL), jnp.float32)
    g1 = jnp.ones((1, D_MODEL), jnp.float32);   be1 = jnp.zeros((1, D_MODEL), jnp.float32)
    w1 = w(ks[4], (D_MODEL, D_FF), D_MODEL);    bf1 = jnp.zeros((1, D_FF), jnp.float32)
    w2 = w(ks[5], (D_FF, D_MODEL), D_FF);       bf2 = jnp.zeros((1, D_MODEL), jnp.float32)
    g2 = jnp.ones((1, D_MODEL), jnp.float32);   be2 = jnp.zeros((1, D_MODEL), jnp.float32)
    return (wq, bq, wk, bk, wv, bv, wo, bo, g1, be1, w1, bf1, w2, bf2, g2, be2)


if __name__ == "__main__":
    key = jax.random.PRNGKey(0)
    kq, kk, kv, kg, kp, kpar = jax.random.split(key, 6)

    queries = jax.random.normal(kq, (B, N, D_MODEL), jnp.float32)
    keys    = jax.random.normal(kk, (B, N, D_MODEL), jnp.float32)
    values  = jax.random.normal(kv, (B, N, D_MODEL), jnp.float32)
    # relative geometry weights are post-ReLU in the reference model -> non-negative
    rel_geo = jax.nn.relu(jax.random.normal(kg, (B, H, N, N), jnp.float32))
    pos     = jax.random.normal(kp, (B, N, D_MODEL), jnp.float32) * 0.1
    # partially-populated attention mask to exercise the masking path
    mask    = jnp.zeros((B, 1, N, N), jnp.float32).at[1, 0, :, N - 1].set(1.0)

    params = make_params(kpar)

    out = encoder_layer(queries, keys, values, rel_geo, pos, mask, params)
    out = jax.block_until_ready(out)

    ref = encoder_layer_ref(queries, keys, values, rel_geo, pos, mask, params)
    assert out.shape == (B, N, D_MODEL)
    # Softmax normalization is exact (plain divide).  The remaining tolerance covers the
    # bf16 MXU operands (weights + activations) used for every matmul per the perf review;
    # elementwise/LayerNorm math stays f32.
    assert jnp.allclose(out, ref, atol=5e-2, rtol=5e-2), \
        f"max abs diff {float(jnp.max(jnp.abs(out - ref)))}"

    print("KERNEL_OK")
</pallas_src>

<mosaic_0001>
module attributes {stable_mosaic.version = 11 : i64} {
  func.func @encoder_layer_kernel(%arg0: i32, %arg1: memref<4x16x32xf32, #tpu.memory_space<vmem>>, %arg2: memref<2x5x8x8xf32, #tpu.memory_space<vmem>>, %arg3: memref<256x64xbf16, #tpu.memory_space<vmem>>, %arg4: memref<10x64xf32, #tpu.memory_space<vmem>>, %arg5: memref<16x32xf32, #tpu.memory_space<vmem>>, %arg6: memref<16x64xf32, #tpu.memory_space<vmem>>) attributes {dimension_semantics = [#tpu.dimension_semantics<arbitrary>], iteration_bounds = array<i64: 1>, scalar_prefetch = 0 : i64, scratch_operands = 1 : i64, tpu.core_type = #tpu.core_type<tc>, window_params = [{pipeline_mode = #tpu.pipeline_mode<synchronous>, transform_indices = @transform_0, window_bounds = array<i64: 4, 16, 32>}, {pipeline_mode = #tpu.pipeline_mode<synchronous>, transform_indices = @transform_1, window_bounds = array<i64: 2, 5, 8, 8>}, {pipeline_mode = #tpu.pipeline_mode<synchronous>, transform_indices = @transform_2, window_bounds = array<i64: 256, 64>}, {pipeline_mode = #tpu.pipeline_mode<synchronous>, transform_indices = @transform_3, window_bounds = array<i64: 10, 64>}, {pipeline_mode = #tpu.pipeline_mode<synchronous>, transform_indices = @transform_4, window_bounds = array<i64: 16, 32>}]} {
    %c0 = arith.constant 0 : index
    %c0_0 = arith.constant 0 : index
    %c0_1 = arith.constant 0 : index
    %0 = vector.load %arg1[%c0, %c0_0, %c0_1] : memref<4x16x32xf32, #tpu.memory_space<vmem>>, vector<1x16x32xf32>
    %1 = vector.shape_cast %0 : vector<1x16x32xf32> to vector<16x32xf32>
    %c1 = arith.constant 1 : index
    %c0_2 = arith.constant 0 : index
    %c0_3 = arith.constant 0 : index
    %2 = vector.load %arg1[%c1, %c0_2, %c0_3] : memref<4x16x32xf32, #tpu.memory_space<vmem>>, vector<1x16x32xf32>
    %3 = vector.shape_cast %2 : vector<1x16x32xf32> to vector<16x32xf32>
    %c2 = arith.constant 2 : index
    %c0_4 = arith.constant 0 : index
    %c0_5 = arith.constant 0 : index
    %4 = vector.load %arg1[%c2, %c0_4, %c0_5] : memref<4x16x32xf32, #tpu.memory_space<vmem>>, vector<1x16x32xf32>
    %5 = vector.shape_cast %4 : vector<1x16x32xf32> to vector<16x32xf32>
    %c3 = arith.constant 3 : index
    %c0_6 = arith.constant 0 : index
    %c0_7 = arith.constant 0 : index
    %6 = vector.load %arg1[%c3, %c0_6, %c0_7] : memref<4x16x32xf32, #tpu.memory_space<vmem>>, vector<1x16x32xf32>
    %7 = vector.shape_cast %6 : vector<1x16x32xf32> to vector<16x32xf32>
    %8 = arith.addf %1, %7 : vector<16x32xf32>
    %9 = arith.truncf %8 : vector<16x32xf32> to vector<16x32xbf16>
    %10 = arith.addf %3, %7 : vector<16x32xf32>
    %11 = arith.truncf %10 : vector<16x32xf32> to vector<16x32xbf16>
    %12 = arith.addf %5, %7 : vector<16x32xf32>
    %13 = arith.truncf %12 : vector<16x32xf32> to vector<16x32xbf16>
    %c0_8 = arith.constant 0 : index
    %c0_9 = arith.constant 0 : index
    %14 = vector.load %arg3[%c0_8, %c0_9] : memref<256x64xbf16, #tpu.memory_space<vmem>>, vector<32x64xbf16>
    %cst = arith.constant dense<0.000000e+00> : vector<16x64xf32>
    %15 = tpu.matmul %9, %14, %cst {dimension_numbers = #tpu.dot_dimension_numbers<[1], [0], [0], [1], [0, 0, 1, 1], [], []>} : vector<16x32xbf16>, vector<32x64xbf16>, vector<16x64xf32> -> vector<16x64xf32>
    %c0_10 = arith.constant 0 : index
    %c0_11 = arith.constant 0 : index
    %16 = vector.load %arg4[%c0_10, %c0_11] : memref<10x64xf32, #tpu.memory_space<vmem>>, vector<1x64xf32>
    %17 = vector.broadcast %16 : vector<1x64xf32> to vector<16x64xf32>
    %18 = arith.addf %15, %17 : vector<16x64xf32>
    %c32 = arith.constant 32 : index
    %c0_12 = arith.constant 0 : index
    %19 = vector.load %arg3[%c32, %c0_12] : memref<256x64xbf16, #tpu.memory_space<vmem>>, vector<32x64xbf16>
    %cst_13 = arith.constant dense<0.000000e+00> : vector<16x64xf32>
    %20 = tpu.matmul %11, %19, %cst_13 {dimension_numbers = #tpu.dot_dimension_numbers<[1], [0], [0], [1], [0, 0, 1, 1], [], []>} : vector<16x32xbf16>, vector<32x64xbf16>, vector<16x64xf32> -> vector<16x64xf32>
    %c1_14 = arith.constant 1 : index
    %c0_15 = arith.constant 0 : index
    %21 = vector.load %arg4[%c1_14, %c0_15] : memref<10x64xf32, #tpu.memory_space<vmem>>, vector<1x64xf32>
    %22 = vector.broadcast %21 : vector<1x64xf32> to vector<16x64xf32>
    %23 = arith.addf %20, %22 : vector<16x64xf32>
    %c64 = arith.constant 64 : index
    %c0_16 = arith.constant 0 : index
    %24 = vector.load %arg3[%c64, %c0_16] : memref<256x64xbf16, #tpu.memory_space<vmem>>, vector<32x64xbf16>
    %cst_17 = arith.constant dense<0.000000e+00> : vector<16x64xf32>
    %25 = tpu.matmul %13, %24, %cst_17 {dimension_numbers = #tpu.dot_dimension_numbers<[1], [0], [0], [1], [0, 0, 1, 1], [], []>} : vector<16x32xbf16>, vector<32x64xbf16>, vector<16x64xf32> -> vector<16x64xf32>
    %c2_18 = arith.constant 2 : index
    %c0_19 = arith.constant 0 : index
    %26 = vector.load %arg4[%c2_18, %c0_19] : memref<10x64xf32, #tpu.memory_space<vmem>>, vector<1x64xf32>
    %27 = vector.broadcast %26 : vector<1x64xf32> to vector<16x64xf32>
    %28 = arith.addf %25, %27 : vector<16x64xf32>
    %29 = arith.truncf %18 : vector<16x64xf32> to vector<16x64xbf16>
    %30 = arith.truncf %23 : vector<16x64xf32> to vector<16x64xbf16>
    %31 = arith.truncf %28 : vector<16x64xf32> to vector<16x64xbf16>
    %32 = vector.extract_strided_slice %29 {offsets = [0, 0], sizes = [16, 16], strides = [1, 1]} : vector<16x64xbf16> to vector<16x16xbf16>
    %33 = vector.extract_strided_slice %30 {offsets = [0, 0], sizes = [16, 16], strides = [1, 1]} : vector<16x64xbf16> to vector<16x16xbf16>
    %34 = vector.extract_strided_slice %31 {offsets = [0, 0], sizes = [16, 16], strides = [1, 1]} : vector<16x64xbf16> to vector<16x16xbf16>
    %35 = vector.extract_strided_slice %32 {offsets = [0, 0], sizes = [8, 16], strides = [1, 1]} : vector<16x16xbf16> to vector<8x16xbf16>
    %36 = vector.extract_strided_slice %33 {offsets = [0, 0], sizes = [8, 16], strides = [1, 1]} : vector<16x16xbf16> to vector<8x16xbf16>
    %37 = vector.extract_strided_slice %34 {offsets = [0, 0], sizes = [8, 16], strides = [1, 1]} : vector<16x16xbf16> to vector<8x16xbf16>
    %cst_20 = arith.constant dense<0.000000e+00> : vector<8x8xf32>
    %38 = tpu.matmul %35, %36, %cst_20 {dimension_numbers = #tpu.dot_dimension_numbers<[1], [1], [0], [0], [0, 0, 1, 0], [], []>} : vector<8x16xbf16>, vector<8x16xbf16>, vector<8x8xf32> -> vector<8x8xf32>
    %c0_21 = arith.constant 0 : index
    %c0_22 = arith.constant 0 : index
    %c0_23 = arith.constant 0 : index
    %c0_24 = arith.constant 0 : index
    %39 = vector.load %arg2[%c0_21, %c0_22, %c0_23, %c0_24] : memref<2x5x8x8xf32, #tpu.memory_space<vmem>>, vector<1x1x8x8xf32>
    %40 = vector.shape_cast %39 : vector<1x1x8x8xf32> to vector<8x8xf32>
    %c0_25 = arith.constant 0 : index
    %c4 = arith.constant 4 : index
    %c0_26 = arith.constant 0 : index
    %c0_27 = arith.constant 0 : index
    %41 = vector.load %arg2[%c0_25, %c4, %c0_26, %c0_27] : memref<2x5x8x8xf32, #tpu.memory_space<vmem>>, vector<1x1x8x8xf32>
    %42 = vector.shape_cast %41 : vector<1x1x8x8xf32> to vector<8x8xf32>
    %cst_28 = arith.constant 9.99999997E-7 : f32
    %43 = vector.broadcast %cst_28 : f32 to vector<8x8xf32>
    %44 = arith.maximumf %40, %43 : vector<8x8xf32>
    %45 = math.log %44 : vector<8x8xf32>
    %46 = arith.addf %38, %45 : vector<8x8xf32>
    %cst_29 = arith.constant 0.000000e+00 : f32
    %47 = vector.broadcast %cst_29 : f32 to vector<8x8xf32>
    %48 = arith.cmpf ogt, %42, %47 : vector<8x8xf32>
    %cst_30 = arith.constant -1.000000e+09 : f32
    %49 = vector.broadcast %cst_30 : f32 to vector<8x8xf32>
    %50 = arith.select %48, %49, %46 : vector<8x8xi1>, vector<8x8xf32>
    %cst_31 = arith.constant dense<0xFF800000> : vector<8xf32>
    %51 = vector.multi_reduction <maximumf>, %50, %cst_31 [1] : vector<8x8xf32> to vector<8xf32>
    %52 = vector.shape_cast %51 : vector<8xf32> to vector<8x1xf32>
    %53 = vector.broadcast %52 : vector<8x1xf32> to vector<8x8xf32>
    %54 = arith.subf %50, %53 : vector<8x8xf32>
    %55 = math.exp %54 : vector<8x8xf32>
    %cst_32 = arith.constant dense<0.000000e+00> : vector<8xf32>
    %56 = vector.multi_reduction <add>, %55, %cst_32 [1] : vector<8x8xf32> to vector<8xf32>
    %57 = vector.shape_cast %56 : vector<8xf32> to vector<8x1xf32>
    %58 = vector.broadcast %57 : vector<8x1xf32> to vector<8x8xf32>
    %59 = arith.divf %55, %58 : vector<8x8xf32>
    %60 = arith.truncf %59 : vector<8x8xf32> to vector<8x8xbf16>
    %cst_33 = arith.constant dense<0.000000e+00> : vector<8x16xf32>
    %61 = tpu.matmul %60, %37, %cst_33 {dimension_numbers = #tpu.dot_dimension_numbers<[1], [0], [0], [1], [0, 0, 1, 1], [], []>} : vector<8x8xbf16>, vector<8x16xbf16>, vector<8x16xf32> -> vector<8x16xf32>
    %c0_34 = arith.constant 0 : index
    %c0_35 = arith.constant 0 : index
    %62 = vector.load %arg6[%c0_34, %c0_35] : memref<16x64xf32, #tpu.memory_space<vmem>>, vector<8x16xf32>
    tpu.vector_store %arg6[%c0_34, %c0_35], %61 {strides = array<i32>} : memref<16x64xf32, #tpu.memory_space<vmem>>, vector<8x16xf32>,
    %63 = vector.extract_strided_slice %32 {offsets = [8, 0], sizes = [8, 16], strides = [1, 1]} : vector<16x16xbf16> to vector<8x16xbf16>
    %64 = vector.extract_strided_slice %33 {offsets = [8, 0], sizes = [8, 16], strides = [1, 1]} : vector<16x16xbf16> to vector<8x16xbf16>
    %65 = vector.extract_strided_slice %34 {offsets = [8, 0], sizes = [8, 16], strides = [1, 1]} : vector<16x16xbf16> to vector<8x16xbf16>
    %cst_36 = arith.constant dense<0.000000e+00> : vector<8x8xf32>
    %66 = tpu.matmul %63, %64, %cst_36 {dimension_numbers = #tpu.dot_dimension_numbers<[1], [1], [0], [0], [0, 0, 1, 0], [], []>} : vector<8x16xbf16>, vector<8x16xbf16>, vector<8x8xf32> -> vector<8x8xf32>
    %c1_37 = arith.constant 1 : index
    %c0_38 = arith.constant 0 : index
    %c0_39 = arith.constant 0 : index
    %c0_40 = arith.constant 0 : index
    %67 = vector.load %arg2[%c1_37, %c0_38, %c0_39, %c0_40] : memref<2x5x8x8xf32, #tpu.memory_space<vmem>>, vector<1x1x8x8xf32>
    %68 = vector.shape_cast %67 : vector<1x1x8x8xf32> to vector<8x8xf32>
    %c1_41 = arith.constant 1 : index
    %c4_42 = arith.constant 4 : index
    %c0_43 = arith.constant 0 : index
    %c0_44 = arith.constant 0 : index
    %69 = vector.load %arg2[%c1_41, %c4_42, %c0_43, %c0_44] : memref<2x5x8x8xf32, #tpu.memory_space<vmem>>, vector<1x1x8x8xf32>
    %70 = vector.shape_cast %69 : vector<1x1x8x8xf32> to vector<8x8xf32>
    %cst_45 = arith.constant 9.99999997E-7 : f32
    %71 = vector.broadcast %cst_45 : f32 to vector<8x8xf32>
    %72 = arith.maximumf %68, %71 : vector<8x8xf32>
    %73 = math.log %72 : vector<8x8xf32>
    %74 = arith.addf %66, %73 : vector<8x8xf32>
    %cst_46 = arith.constant 0.000000e+00 : f32
    %75 = vector.broadcast %cst_46 : f32 to vector<8x8xf32>
    %76 = arith.cmpf ogt, %70, %75 : vector<8x8xf32>
    %cst_47 = arith.constant -1.000000e+09 : f32
    %77 = vector.broadcast %cst_47 : f32 to vector<8x8xf32>
    %78 = arith.select %76, %77, %74 : vector<8x8xi1>, vector<8x8xf32>
    %cst_48 = arith.constant dense<0xFF800000> : vector<8xf32>
    %79 = vector.multi_reduction <maximumf>, %78, %cst_48 [1] : vector<8x8xf32> to vector<8xf32>
    %80 = vector.shape_cast %79 : vector<8xf32> to vector<8x1xf32>
    %81 = vector.broadcast %80 : vector<8x1xf32> to vector<8x8xf32>
    %82 = arith.subf %78, %81 : vector<8x8xf32>
    %83 = math.exp %82 : vector<8x8xf32>
    %cst_49 = arith.constant dense<0.000000e+00> : vector<8xf32>
    %84 = vector.multi_reduction <add>, %83, %cst_49 [1] : vector<8x8xf32> to vector<8xf32>
    %85 = vector.shape_cast %84 : vector<8xf32> to vector<8x1xf32>
    %86 = vector.broadcast %85 : vector<8x1xf32> to vector<8x8xf32>
    %87 = arith.divf %83, %86 : vector<8x8xf32>
    %88 = arith.truncf %87 : vector<8x8xf32> to vector<8x8xbf16>
    %cst_50 = arith.constant dense<0.000000e+00> : vector<8x16xf32>
    %89 = tpu.matmul %88, %65, %cst_50 {dimension_numbers = #tpu.dot_dimension_numbers<[1], [0], [0], [1], [0, 0, 1, 1], [], []>} : vector<8x8xbf16>, vector<8x16xbf16>, vector<8x16xf32> -> vector<8x16xf32>
    %c8 = arith.constant 8 : index
    %c0_51 = arith.constant 0 : index
    %90 = vector.load %arg6[%c8, %c0_51] : memref<16x64xf32, #tpu.memory_space<vmem>>, vector<8x16xf32>
    tpu.vector_store %arg6[%c8, %c0_51], %89 {strides = array<i32>} : memref<16x64xf32, #tpu.memory_space<vmem>>, vector<8x16xf32>,
    %91 = vector.extract_strided_slice %29 {offsets = [0, 16], sizes = [16, 16], strides = [1, 1]} : vector<16x64xbf16> to vector<16x16xbf16>
    %92 = vector.extract_strided_slice %30 {offsets = [0, 16], sizes = [16, 16], strides = [1, 1]} : vector<16x64xbf16> to vector<16x16xbf16>
    %93 = vector.extract_strided_slice %31 {offsets = [0, 16], sizes = [16, 16], strides = [1, 1]} : vector<16x64xbf16> to vector<16x16xbf16>
    %94 = vector.extract_strided_slice %91 {offsets = [0, 0], sizes = [8, 16], strides = [1, 1]} : vector<16x16xbf16> to vector<8x16xbf16>
    %95 = vector.extract_strided_slice %92 {offsets = [0, 0], sizes = [8, 16], strides = [1, 1]} : vector<16x16xbf16> to vector<8x16xbf16>
    %96 = vector.extract_strided_slice %93 {offsets = [0, 0], sizes = [8, 16], strides = [1, 1]} : vector<16x16xbf16> to vector<8x16xbf16>
    %cst_52 = arith.constant dense<0.000000e+00> : vector<8x8xf32>
    %97 = tpu.matmul %94, %95, %cst_52 {dimension_numbers = #tpu.dot_dimension_numbers<[1], [1], [0], [0], [0, 0, 1, 0], [], []>} : vector<8x16xbf16>, vector<8x16xbf16>, vector<8x8xf32> -> vector<8x8xf32>
    %c0_53 = arith.constant 0 : index
    %c1_54 = arith.constant 1 : index
    %c0_55 = arith.constant 0 : index
    %c0_56 = arith.constant 0 : index
    %98 = vector.load %arg2[%c0_53, %c1_54, %c0_55, %c0_56] : memref<2x5x8x8xf32, #tpu.memory_space<vmem>>, vector<1x1x8x8xf32>
    %99 = vector.shape_cast %98 : vector<1x1x8x8xf32> to vector<8x8xf32>
    %c0_57 = arith.constant 0 : index
    %c4_58 = arith.constant 4 : index
    %c0_59 = arith.constant 0 : index
    %c0_60 = arith.constant 0 : index
    %100 = vector.load %arg2[%c0_57, %c4_58, %c0_59, %c0_60] : memref<2x5x8x8xf32, #tpu.memory_space<vmem>>, vector<1x1x8x8xf32>
    %101 = vector.shape_cast %100 : vector<1x1x8x8xf32> to vector<8x8xf32>
    %cst_61 = arith.constant 9.99999997E-7 : f32
    %102 = vector.broadcast %cst_61 : f32 to vector<8x8xf32>
    %103 = arith.maximumf %99, %102 : vector<8x8xf32>
    %104 = math.log %103 : vector<8x8xf32>
    %105 = arith.addf %97, %104 : vector<8x8xf32>
    %cst_62 = arith.constant 0.000000e+00 : f32
    %106 = vector.broadcast %cst_62 : f32 to vector<8x8xf32>
    %107 = arith.cmpf ogt, %101, %106 : vector<8x8xf32>
    %cst_63 = arith.constant -1.000000e+09 : f32
    %108 = vector.broadcast %cst_63 : f32 to vector<8x8xf32>
    %109 = arith.select %107, %108, %105 : vector<8x8xi1>, vector<8x8xf32>
    %cst_64 = arith.constant dense<0xFF800000> : vector<8xf32>
    %110 = vector.multi_reduction <maximumf>, %109, %cst_64 [1] : vector<8x8xf32> to vector<8xf32>
    %111 = vector.shape_cast %110 : vector<8xf32> to vector<8x1xf32>
    %112 = vector.broadcast %111 : vector<8x1xf32> to vector<8x8xf32>
    %113 = arith.subf %109, %112 : vector<8x8xf32>
    %114 = math.exp %113 : vector<8x8xf32>
    %cst_65 = arith.constant dense<0.000000e+00> : vector<8xf32>
    %115 = vector.multi_reduction <add>, %114, %cst_65 [1] : vector<8x8xf32> to vector<8xf32>
    %116 = vector.shape_cast %115 : vector<8xf32> to vector<8x1xf32>
    %117 = vector.broadcast %116 : vector<8x1xf32> to vector<8x8xf32>
    %118 = arith.divf %114, %117 : vector<8x8xf32>
    %119 = arith.truncf %118 : vector<8x8xf32> to vector<8x8xbf16>
    %cst_66 = arith.constant dense<0.000000e+00> : vector<8x16xf32>
    %120 = tpu.matmul %119, %96, %cst_66 {dimension_numbers = #tpu.dot_dimension_numbers<[1], [0], [0], [1], [0, 0, 1, 1], [], []>} : vector<8x8xbf16>, vector<8x16xbf16>, vector<8x16xf32> -> vector<8x16xf32>
    %c0_67 = arith.constant 0 : index
    %c16 = arith.constant 16 : index
    %121 = vector.load %arg6[%c0_67, %c16] : memref<16x64xf32, #tpu.memory_space<vmem>>, vector<8x16xf32>
    tpu.vector_store %arg6[%c0_67, %c16], %120 {strides = array<i32>} : memref<16x64xf32, #tpu.memory_space<vmem>>, vector<8x16xf32>,
    %122 = vector.extract_strided_slice %91 {offsets = [8, 0], sizes = [8, 16], strides = [1, 1]} : vector<16x16xbf16> to vector<8x16xbf16>
    %123 = vector.extract_strided_slice %92 {offsets = [8, 0], sizes = [8, 16], strides = [1, 1]} : vector<16x16xbf16> to vector<8x16xbf16>
    %124 = vector.extract_strided_slice %93 {offsets = [8, 0], sizes = [8, 16], strides = [1, 1]} : vector<16x16xbf16> to vector<8x16xbf16>
    %cst_68 = arith.constant dense<0.000000e+00> : vector<8x8xf32>
    %125 = tpu.matmul %122, %123, %cst_68 {dimension_numbers = #tpu.dot_dimension_numbers<[1], [1], [0], [0], [0, 0, 1, 0], [], []>} : vector<8x16xbf16>, vector<8x16xbf16>, vector<8x8xf32> -> vector<8x8xf32>
    %c1_69 = arith.constant 1 : index
    %c1_70 = arith.constant 1 : index
    %c0_71 = arith.constant 0 : index
    %c0_72 = arith.constant 0 : index
    %126 = vector.load %arg2[%c1_69, %c1_70, %c0_71, %c0_72] : memref<2x5x8x8xf32, #tpu.memory_space<vmem>>, vector<1x1x8x8xf32>
    %127 = vector.shape_cast %126 : vector<1x1x8x8xf32> to vector<8x8xf32>
    %c1_73 = arith.constant 1 : index
    %c4_74 = arith.constant 4 : index
    %c0_75 = arith.constant 0 : index
    %c0_76 = arith.constant 0 : index
    %128 = vector.load %arg2[%c1_73, %c4_74, %c0_75, %c0_76] : memref<2x5x8x8xf32, #tpu.memory_space<vmem>>, vector<1x1x8x8xf32>
    %129 = vector.shape_cast %128 : vector<1x1x8x8xf32> to vector<8x8xf32>
    %cst_77 = arith.constant 9.99999997E-7 : f32
    %130 = vector.broadcast %cst_77 : f32 to vector<8x8xf32>
    %131 = arith.maximumf %127, %130 : vector<8x8xf32>
    %132 = math.log %131 : vector<8x8xf32>
    %133 = arith.addf %125, %132 : vector<8x8xf32>
    %cst_78 = arith.constant 0.000000e+00 : f32
    %134 = vector.broadcast %cst_78 : f32 to vector<8x8xf32>
    %135 = arith.cmpf ogt, %129, %134 : vector<8x8xf32>
    %cst_79 = arith.constant -1.000000e+09 : f32
    %136 = vector.broadcast %cst_79 : f32 to vector<8x8xf32>
    %137 = arith.select %135, %136, %133 : vector<8x8xi1>, vector<8x8xf32>
    %cst_80 = arith.constant dense<0xFF800000> : vector<8xf32>
    %138 = vector.multi_reduction <maximumf>, %137, %cst_80 [1] : vector<8x8xf32> to vector<8xf32>
    %139 = vector.shape_cast %138 : vector<8xf32> to vector<8x1xf32>
    %140 = vector.broadcast %139 : vector<8x1xf32> to vector<8x8xf32>
    %141 = arith.subf %137, %140 : vector<8x8xf32>
    %142 = math.exp %141 : vector<8x8xf32>
    %cst_81 = arith.constant dense<0.000000e+00> : vector<8xf32>
    %143 = vector.multi_reduction <add>, %142, %cst_81 [1] : vector<8x8xf32> to vector<8xf32>
    %144 = vector.shape_cast %143 : vector<8xf32> to vector<8x1xf32>
    %145 = vector.broadcast %144 : vector<8x1xf32> to vector<8x8xf32>
    %146 = arith.divf %142, %145 : vector<8x8xf32>
    %147 = arith.truncf %146 : vector<8x8xf32> to vector<8x8xbf16>
    %cst_82 = arith.constant dense<0.000000e+00> : vector<8x16xf32>
    %148 = tpu.matmul %147, %124, %cst_82 {dimension_numbers = #tpu.dot_dimension_numbers<[1], [0], [0], [1], [0, 0, 1, 1], [], []>} : vector<8x8xbf16>, vector<8x16xbf16>, vector<8x16xf32> -> vector<8x16xf32>
    %c8_83 = arith.constant 8 : index
    %c16_84 = arith.constant 16 : index
    %149 = vector.load %arg6[%c8_83, %c16_84] : memref<16x64xf32, #tpu.memory_space<vmem>>, vector<8x16xf32>
    tpu.vector_store %arg6[%c8_83, %c16_84], %148 {strides = array<i32>} : memref<16x64xf32, #tpu.memory_space<vmem>>, vector<8x16xf32>,
    %150 = vector.extract_strided_slice %29 {offsets = [0, 32], sizes = [16, 16], strides = [1, 1]} : vector<16x64xbf16> to vector<16x16xbf16>
    %151 = vector.extract_strided_slice %30 {offsets = [0, 32], sizes = [16, 16], strides = [1, 1]} : vector<16x64xbf16> to vector<16x16xbf16>
    %152 = vector.extract_strided_slice %31 {offsets = [0, 32], sizes = [16, 16], strides = [1, 1]} : vector<16x64xbf16> to vector<16x16xbf16>
    %153 = vector.extract_strided_slice %150 {offsets = [0, 0], sizes = [8, 16], strides = [1, 1]} : vector<16x16xbf16> to vector<8x16xbf16>
    %154 = vector.extract_strided_slice %151 {offsets = [0, 0], sizes = [8, 16], strides = [1, 1]} : vector<16x16xbf16> to vector<8x16xbf16>
    %155 = vector.extract_strided_slice %152 {offsets = [0, 0], sizes = [8, 16], strides = [1, 1]} : vector<16x16xbf16> to vector<8x16xbf16>
    %cst_85 = arith.constant dense<0.000000e+00> : vector<8x8xf32>
    %156 = tpu.matmul %153, %154, %cst_85 {dimension_numbers = #tpu.dot_dimension_numbers<[1], [1], [0], [0], [0, 0, 1, 0], [], []>} : vector<8x16xbf16>, vector<8x16xbf16>, vector<8x8xf32> -> vector<8x8xf32>
    %c0_86 = arith.constant 0 : index
    %c2_87 = arith.constant 2 : index
    %c0_88 = arith.constant 0 : index
    %c0_89 = arith.constant 0 : index
    %157 = vector.load %arg2[%c0_86, %c2_87, %c0_88, %c0_89] : memref<2x5x8x8xf32, #tpu.memory_space<vmem>>, vector<1x1x8x8xf32>
    %158 = vector.shape_cast %157 : vector<1x1x8x8xf32> to vector<8x8xf32>
    %c0_90 = arith.constant 0 : index
    %c4_91 = arith.constant 4 : index
    %c0_92 = arith.constant 0 : index
    %c0_93 = arith.constant 0 : index
    %159 = vector.load %arg2[%c0_90, %c4_91, %c0_92, %c0_93] : memref<2x5x8x8xf32, #tpu.memory_space<vmem>>, vector<1x1x8x8xf32>
    %160 = vector.shape_cast %159 : vector<1x1x8x8xf32> to vector<8x8xf32>
    %cst_94 = arith.constant 9.99999997E-7 : f32
    %161 = vector.broadcast %cst_94 : f32 to vector<8x8xf32>
    %162 = arith.maximumf %158, %161 : vector<8x8xf32>
    %163 = math.log %162 : vector<8x8xf32>
    %164 = arith.addf %156, %163 : vector<8x8xf32>
    %cst_95 = arith.constant 0.000000e+00 : f32
    %165 = vector.broadcast %cst_95 : f32 to vector<8x8xf32>
    %166 = arith.cmpf ogt, %160, %165 : vector<8x8xf32>
    %cst_96 = arith.constant -1.000000e+09 : f32
    %167 = vector.broadcast %cst_96 : f32 to vector<8x8xf32>
    %168 = arith.select %166, %167, %164 : vector<8x8xi1>, vector<8x8xf32>
    %cst_97 = arith.constant dense<0xFF800000> : vector<8xf32>
    %169 = vector.multi_reduction <maximumf>, %168, %cst_97 [1] : vector<8x8xf32> to vector<8xf32>
    %170 = vector.shape_cast %169 : vector<8xf32> to vector<8x1xf32>
    %171 = vector.broadcast %170 : vector<8x1xf32> to vector<8x8xf32>
    %172 = arith.subf %168, %171 : vector<8x8xf32>
    %173 = math.exp %172 : vector<8x8xf32>
    %cst_98 = arith.constant dense<0.000000e+00> : vector<8xf32>
    %174 = vector.multi_reduction <add>, %173, %cst_98 [1] : vector<8x8xf32> to vector<8xf32>
    %175 = vector.shape_cast %174 : vector<8xf32> to vector<8x1xf32>
    %176 = vector.broadcast %175 : vector<8x1xf32> to vector<8x8xf32>
    %177 = arith.divf %173, %176 : vector<8x8xf32>
    %178 = arith.truncf %177 : vector<8x8xf32> to vector<8x8xbf16>
    %cst_99 = arith.constant dense<0.000000e+00> : vector<8x16xf32>
    %179 = tpu.matmul %178, %155, %cst_99 {dimension_numbers = #tpu.dot_dimension_numbers<[1], [0], [0], [1], [0, 0, 1, 1], [], []>} : vector<8x8xbf16>, vector<8x16xbf16>, vector<8x16xf32> -> vector<8x16xf32>
    %c0_100 = arith.constant 0 : index
    %c32_101 = arith.constant 32 : index
    %180 = vector.load %arg6[%c0_100, %c32_101] : memref<16x64xf32, #tpu.memory_space<vmem>>, vector<8x16xf32>
    tpu.vector_store %arg6[%c0_100, %c32_101], %179 {strides = array<i32>} : memref<16x64xf32, #tpu.memory_space<vmem>>, vector<8x16xf32>,
    %181 = vector.extract_strided_slice %150 {offsets = [8, 0], sizes = [8, 16], strides = [1, 1]} : vector<16x16xbf16> to vector<8x16xbf16>
    %182 = vector.extract_strided_slice %151 {offsets = [8, 0], sizes = [8, 16], strides = [1, 1]} : vector<16x16xbf16> to vector<8x16xbf16>
    %183 = vector.extract_strided_slice %152 {offsets = [8, 0], sizes = [8, 16], strides = [1, 1]} : vector<16x16xbf16> to vector<8x16xbf16>
    %cst_102 = arith.constant dense<0.000000e+00> : vector<8x8xf32>
    %184 = tpu.matmul %181, %182, %cst_102 {dimension_numbers = #tpu.dot_dimension_numbers<[1], [1], [0], [0], [0, 0, 1, 0], [], []>} : vector<8x16xbf16>, vector<8x16xbf16>, vector<8x8xf32> -> vector<8x8xf32>
    %c1_103 = arith.constant 1 : index
    %c2_104 = arith.constant 2 : index
    %c0_105 = arith.constant 0 : index
    %c0_106 = arith.constant 0 : index
    %185 = vector.load %arg2[%c1_103, %c2_104, %c0_105, %c0_106] : memref<2x5x8x8xf32, #tpu.memory_space<vmem>>, vector<1x1x8x8xf32>
    %186 = vector.shape_cast %185 : vector<1x1x8x8xf32> to vector<8x8xf32>
    %c1_107 = arith.constant 1 : index
    %c4_108 = arith.constant 4 : index
    %c0_109 = arith.constant 0 : index
    %c0_110 = arith.constant 0 : index
    %187 = vector.load %arg2[%c1_107, %c4_108, %c0_109, %c0_110] : memref<2x5x8x8xf32, #tpu.memory_space<vmem>>, vector<1x1x8x8xf32>
    %188 = vector.shape_cast %187 : vector<1x1x8x8xf32> to vector<8x8xf32>
    %cst_111 = arith.constant 9.99999997E-7 : f32
    %189 = vector.broadcast %cst_111 : f32 to vector<8x8xf32>
    %190 = arith.maximumf %186, %189 : vector<8x8xf32>
    %191 = math.log %190 : vector<8x8xf32>
    %192 = arith.addf %184, %191 : vector<8x8xf32>
    %cst_112 = arith.constant 0.000000e+00 : f32
    %193 = vector.broadcast %cst_112 : f32 to vector<8x8xf32>
    %194 = arith.cmpf ogt, %188, %193 : vector<8x8xf32>
    %cst_113 = arith.constant -1.000000e+09 : f32
    %195 = vector.broadcast %cst_113 : f32 to vector<8x8xf32>
    %196 = arith.select %194, %195, %192 : vector<8x8xi1>, vector<8x8xf32>
    %cst_114 = arith.constant dense<0xFF800000> : vector<8xf32>
    %197 = vector.multi_reduction <maximumf>, %196, %cst_114 [1] : vector<8x8xf32> to vector<8xf32>
    %198 = vector.shape_cast %197 : vector<8xf32> to vector<8x1xf32>
    %199 = vector.broadcast %198 : vector<8x1xf32> to vector<8x8xf32>
    %200 = arith.subf %196, %199 : vector<8x8xf32>
    %201 = math.exp %200 : vector<8x8xf32>
    %cst_115 = arith.constant dense<0.000000e+00> : vector<8xf32>
    %202 = vector.multi_reduction <add>, %201, %cst_115 [1] : vector<8x8xf32> to vector<8xf32>
    %203 = vector.shape_cast %202 : vector<8xf32> to vector<8x1xf32>
    %204 = vector.broadcast %203 : vector<8x1xf32> to vector<8x8xf32>
    %205 = arith.divf %201, %204 : vector<8x8xf32>
    %206 = arith.truncf %205 : vector<8x8xf32> to vector<8x8xbf16>
    %cst_116 = arith.constant dense<0.000000e+00> : vector<8x16xf32>
    %207 = tpu.matmul %206, %183, %cst_116 {dimension_numbers = #tpu.dot_dimension_numbers<[1], [0], [0], [1], [0, 0, 1, 1], [], []>} : vector<8x8xbf16>, vector<8x16xbf16>, vector<8x16xf32> -> vector<8x16xf32>
    %c8_117 = arith.constant 8 : index
    %c32_118 = arith.constant 32 : index
    %208 = vector.load %arg6[%c8_117, %c32_118] : memref<16x64xf32, #tpu.memory_space<vmem>>, vector<8x16xf32>
    tpu.vector_store %arg6[%c8_117, %c32_118], %207 {strides = array<i32>} : memref<16x64xf32, #tpu.memory_space<vmem>>, vector<8x16xf32>,
    %209 = vector.extract_strided_slice %29 {offsets = [0, 48], sizes = [16, 16], strides = [1, 1]} : vector<16x64xbf16> to vector<16x16xbf16>
    %210 = vector.extract_strided_slice %30 {offsets = [0, 48], sizes = [16, 16], strides = [1, 1]} : vector<16x64xbf16> to vector<16x16xbf16>
    %211 = vector.extract_strided_slice %31 {offsets = [0, 48], sizes = [16, 16], strides = [1, 1]} : vector<16x64xbf16> to vector<16x16xbf16>
    %212 = vector.extract_strided_slice %209 {offsets = [0, 0], sizes = [8, 16], strides = [1, 1]} : vector<16x16xbf16> to vector<8x16xbf16>
    %213 = vector.extract_strided_slice %210 {offsets = [0, 0], sizes = [8, 16], strides = [1, 1]} : vector<16x16xbf16> to vector<8x16xbf16>
    %214 = vector.extract_strided_slice %211 {offsets = [0, 0], sizes = [8, 16], strides = [1, 1]} : vector<16x16xbf16> to vector<8x16xbf16>
    %cst_119 = arith.constant dense<0.000000e+00> : vector<8x8xf32>
    %215 = tpu.matmul %212, %213, %cst_119 {dimension_numbers = #tpu.dot_dimension_numbers<[1], [1], [0], [0], [0, 0, 1, 0], [], []>} : vector<8x16xbf16>, vector<8x16xbf16>, vector<8x8xf32> -> vector<8x8xf32>
    %c0_120 = arith.constant 0 : index
    %c3_121 = arith.constant 3 : index
    %c0_122 = arith.constant 0 : index
    %c0_123 = arith.constant 0 : index
    %216 = vector.load %arg2[%c0_120, %c3_121, %c0_122, %c0_123] : memref<2x5x8x8xf32, #tpu.memory_space<vmem>>, vector<1x1x8x8xf32>
    %217 = vector.shape_cast %216 : vector<1x1x8x8xf32> to vector<8x8xf32>
    %c0_124 = arith.constant 0 : index
    %c4_125 = arith.constant 4 : index
    %c0_126 = arith.constant 0 : index
    %c0_127 = arith.constant 0 : index
    %218 = vector.load %arg2[%c0_124, %c4_125, %c0_126, %c0_127] : memref<2x5x8x8xf32, #tpu.memory_space<vmem>>, vector<1x1x8x8xf32>
    %219 = vector.shape_cast %218 : vector<1x1x8x8xf32> to vector<8x8xf32>
    %cst_128 = arith.constant 9.99999997E-7 : f32
    %220 = vector.broadcast %cst_128 : f32 to vector<8x8xf32>
    %221 = arith.maximumf %217, %220 : vector<8x8xf32>
    %222 = math.log %221 : vector<8x8xf32>
    %223 = arith.addf %215, %222 : vector<8x8xf32>
    %cst_129 = arith.constant 0.000000e+00 : f32
    %224 = vector.broadcast %cst_129 : f32 to vector<8x8xf32>
    %225 = arith.cmpf ogt, %219, %224 : vector<8x8xf32>
    %cst_130 = arith.constant -1.000000e+09 : f32
    %226 = vector.broadcast %cst_130 : f32 to vector<8x8xf32>
    %227 = arith.select %225, %226, %223 : vector<8x8xi1>, vector<8x8xf32>
    %cst_131 = arith.constant dense<0xFF800000> : vector<8xf32>
    %228 = vector.multi_reduction <maximumf>, %227, %cst_131 [1] : vector<8x8xf32> to vector<8xf32>
    %229 = vector.shape_cast %228 : vector<8xf32> to vector<8x1xf32>
    %230 = vector.broadcast %229 : vector<8x1xf32> to vector<8x8xf32>
    %231 = arith.subf %227, %230 : vector<8x8xf32>
    %232 = math.exp %231 : vector<8x8xf32>
    %cst_132 = arith.constant dense<0.000000e+00> : vector<8xf32>
    %233 = vector.multi_reduction <add>, %232, %cst_132 [1] : vector<8x8xf32> to vector<8xf32>
    %234 = vector.shape_cast %233 : vector<8xf32> to vector<8x1xf32>
    %235 = vector.broadcast %234 : vector<8x1xf32> to vector<8x8xf32>
    %236 = arith.divf %232, %235 : vector<8x8xf32>
    %237 = arith.truncf %236 : vector<8x8xf32> to vector<8x8xbf16>
    %cst_133 = arith.constant dense<0.000000e+00> : vector<8x16xf32>
    %238 = tpu.matmul %237, %214, %cst_133 {dimension_numbers = #tpu.dot_dimension_numbers<[1], [0], [0], [1], [0, 0, 1, 1], [], []>} : vector<8x8xbf16>, vector<8x16xbf16>, vector<8x16xf32> -> vector<8x16xf32>
    %c0_134 = arith.constant 0 : index
    %c48 = arith.constant 48 : index
    %239 = vector.load %arg6[%c0_134, %c48] : memref<16x64xf32, #tpu.memory_space<vmem>>, vector<8x16xf32>
    tpu.vector_store %arg6[%c0_134, %c48], %238 {strides = array<i32>} : memref<16x64xf32, #tpu.memory_space<vmem>>, vector<8x16xf32>,
    %240 = vector.extract_strided_slice %209 {offsets = [8, 0], sizes = [8, 16], strides = [1, 1]} : vector<16x16xbf16> to vector<8x16xbf16>
    %241 = vector.extract_strided_slice %210 {offsets = [8, 0], sizes = [8, 16], strides = [1, 1]} : vector<16x16xbf16> to vector<8x16xbf16>
    %242 = vector.extract_strided_slice %211 {offsets = [8, 0], sizes = [8, 16], strides = [1, 1]} : vector<16x16xbf16> to vector<8x16xbf16>
    %cst_135 = arith.constant dense<0.000000e+00> : vector<8x8xf32>
    %243 = tpu.matmul %240, %241, %cst_135 {dimension_numbers = #tpu.dot_dimension_numbers<[1], [1], [0], [0], [0, 0, 1, 0], [], []>} : vector<8x16xbf16>, vector<8x16xbf16>, vector<8x8xf32> -> vector<8x8xf32>
    %c1_136 = arith.constant 1 : index
    %c3_137 = arith.constant 3 : index
    %c0_138 = arith.constant 0 : index
    %c0_139 = arith.constant 0 : index
    %244 = vector.load %arg2[%c1_136, %c3_137, %c0_138, %c0_139] : memref<2x5x8x8xf32, #tpu.memory_space<vmem>>, vector<1x1x8x8xf32>
    %245 = vector.shape_cast %244 : vector<1x1x8x8xf32> to vector<8x8xf32>
    %c1_140 = arith.constant 1 : index
    %c4_141 = arith.constant 4 : index
    %c0_142 = arith.constant 0 : index
    %c0_143 = arith.constant 0 : index
    %246 = vector.load %arg2[%c1_140, %c4_141, %c0_142, %c0_143] : memref<2x5x8x8xf32, #tpu.memory_space<vmem>>, vector<1x1x8x8xf32>
    %247 = vector.shape_cast %246 : vector<1x1x8x8xf32> to vector<8x8xf32>
    %cst_144 = arith.constant 9.99999997E-7 : f32
    %248 = vector.broadcast %cst_144 : f32 to vector<8x8xf32>
    %249 = arith.maximumf %245, %248 : vector<8x8xf32>
    %250 = math.log %249 : vector<8x8xf32>
    %251 = arith.addf %243, %250 : vector<8x8xf32>
    %cst_145 = arith.constant 0.000000e+00 : f32
    %252 = vector.broadcast %cst_145 : f32 to vector<8x8xf32>
    %253 = arith.cmpf ogt, %247, %252 : vector<8x8xf32>
    %cst_146 = arith.constant -1.000000e+09 : f32
    %254 = vector.broadcast %cst_146 : f32 to vector<8x8xf32>
    %255 = arith.select %253, %254, %251 : vector<8x8xi1>, vector<8x8xf32>
    %cst_147 = arith.constant dense<0xFF800000> : vector<8xf32>
    %256 = vector.multi_reduction <maximumf>, %255, %cst_147 [1] : vector<8x8xf32> to vector<8xf32>
    %257 = vector.shape_cast %256 : vector<8xf32> to vector<8x1xf32>
    %258 = vector.broadcast %257 : vector<8x1xf32> to vector<8x8xf32>
    %259 = arith.subf %255, %258 : vector<8x8xf32>
    %260 = math.exp %259 : vector<8x8xf32>
    %cst_148 = arith.constant dense<0.000000e+00> : vector<8xf32>
    %261 = vector.multi_reduction <add>, %260, %cst_148 [1] : vector<8x8xf32> to vector<8xf32>
    %262 = vector.shape_cast %261 : vector<8xf32> to vector<8x1xf32>
    %263 = vector.broadcast %262 : vector<8x1xf32> to vector<8x8xf32>
    %264 = arith.divf %260, %263 : vector<8x8xf32>
    %265 = arith.truncf %264 : vector<8x8xf32> to vector<8x8xbf16>
    %cst_149 = arith.constant dense<0.000000e+00> : vector<8x16xf32>
    %266 = tpu.matmul %265, %242, %cst_149 {dimension_numbers = #tpu.dot_dimension_numbers<[1], [0], [0], [1], [0, 0, 1, 1], [], []>} : vector<8x8xbf16>, vector<8x16xbf16>, vector<8x16xf32> -> vector<8x16xf32>
    %c8_150 = arith.constant 8 : index
    %c48_151 = arith.constant 48 : index
    %267 = vector.load %arg6[%c8_150, %c48_151] : memref<16x64xf32, #tpu.memory_space<vmem>>, vector<8x16xf32>
    tpu.vector_store %arg6[%c8_150, %c48_151], %266 {strides = array<i32>} : memref<16x64xf32, #tpu.memory_space<vmem>>, vector<8x16xf32>,
    %c0_152 = arith.constant 0 : index
    %c0_153 = arith.constant 0 : index
    %268 = vector.load %arg6[%c0_152, %c0_153] : memref<16x64xf32, #tpu.memory_space<vmem>>, vector<16x64xf32>
    %269 = arith.truncf %268 : vector<16x64xf32> to vector<16x64xbf16>
    %c96 = arith.constant 96 : index
    %c0_154 = arith.constant 0 : index
    %270 = vector.load %arg3[%c96, %c0_154] : memref<256x64xbf16, #tpu.memory_space<vmem>>, vector<64x32xbf16>
    %cst_155 = arith.constant dense<0.000000e+00> : vector<16x32xf32>
    %271 = tpu.matmul %269, %270, %cst_155 {dimension_numbers = #tpu.dot_dimension_numbers<[1], [0], [0], [1], [0, 0, 1, 1], [], []>} : vector<16x64xbf16>, vector<64x32xbf16>, vector<16x32xf32> -> vector<16x32xf32>
    %c3_156 = arith.constant 3 : index
    %c0_157 = arith.constant 0 : index
    %272 = vector.load %arg4[%c3_156, %c0_157] : memref<10x64xf32, #tpu.memory_space<vmem>>, vector<1x32xf32>
    %273 = vector.broadcast %272 : vector<1x32xf32> to vector<16x32xf32>
    %274 = arith.addf %271, %273 : vector<16x32xf32>
    %275 = arith.addf %1, %274 : vector<16x32xf32>
    %cst_158 = arith.constant dense<0.000000e+00> : vector<16xf32>
    %276 = vector.multi_reduction <add>, %275, %cst_158 [1] : vector<16x32xf32> to vector<16xf32>
    %277 = vector.shape_cast %276 : vector<16xf32> to vector<16x1xf32>
    %cst_159 = arith.constant 3.200000e+01 : f32
    %278 = vector.broadcast %cst_159 : f32 to vector<16x1xf32>
    %279 = arith.divf %277, %278 : vector<16x1xf32>
    %280 = vector.broadcast %279 : vector<16x1xf32> to vector<16x32xf32>
    %281 = arith.subf %275, %280 : vector<16x32xf32>
    %282 = vector.broadcast %279 : vector<16x1xf32> to vector<16x32xf32>
    %283 = arith.subf %275, %282 : vector<16x32xf32>
    %284 = arith.mulf %281, %283 : vector<16x32xf32>
    %cst_160 = arith.constant dense<0.000000e+00> : vector<16xf32>
    %285 = vector.multi_reduction <add>, %284, %cst_160 [1] : vector<16x32xf32> to vector<16xf32>
    %286 = vector.shape_cast %285 : vector<16xf32> to vector<16x1xf32>
    %cst_161 = arith.constant 3.200000e+01 : f32
    %287 = vector.broadcast %cst_161 : f32 to vector<16x1xf32>
    %288 = arith.divf %286, %287 : vector<16x1xf32>
    %289 = vector.broadcast %279 : vector<16x1xf32> to vector<16x32xf32>
    %290 = arith.subf %275, %289 : vector<16x32xf32>
    %cst_162 = arith.constant 9.99999974E-6 : f32
    %291 = vector.broadcast %cst_162 : f32 to vector<16x1xf32>
    %292 = arith.addf %288, %291 : vector<16x1xf32>
    %293 = math.rsqrt %292 : vector<16x1xf32>
    %294 = vector.broadcast %293 : vector<16x1xf32> to vector<16x32xf32>
    %295 = arith.mulf %290, %294 : vector<16x32xf32>
    %c4_163 = arith.constant 4 : index
    %c0_164 = arith.constant 0 : index
    %296 = vector.load %arg4[%c4_163, %c0_164] : memref<10x64xf32, #tpu.memory_space<vmem>>, vector<1x32xf32>
    %297 = vector.broadcast %296 : vector<1x32xf32> to vector<16x32xf32>
    %298 = arith.mulf %295, %297 : vector<16x32xf32>
    %c5 = arith.constant 5 : index
    %c0_165 = arith.constant 0 : index
    %299 = vector.load %arg4[%c5, %c0_165] : memref<10x64xf32, #tpu.memory_space<vmem>>, vector<1x32xf32>
    %300 = vector.broadcast %299 : vector<1x32xf32> to vector<16x32xf32>
    %301 = arith.addf %298, %300 : vector<16x32xf32>
    %302 = arith.truncf %301 : vector<16x32xf32> to vector<16x32xbf16>
    %c160 = arith.constant 160 : index
    %c0_166 = arith.constant 0 : index
    %303 = vector.load %arg3[%c160, %c0_166] : memref<256x64xbf16, #tpu.memory_space<vmem>>, vector<32x64xbf16>
    %cst_167 = arith.constant dense<0.000000e+00> : vector<16x64xf32>
    %304 = tpu.matmul %302, %303, %cst_167 {dimension_numbers = #tpu.dot_dimension_numbers<[1], [0], [0], [1], [0, 0, 1, 1], [], []>} : vector<16x32xbf16>, vector<32x64xbf16>, vector<16x64xf32> -> vector<16x64xf32>
    %c6 = arith.constant 6 : index
    %c0_168 = arith.constant 0 : index
    %305 = vector.load %arg4[%c6, %c0_168] : memref<10x64xf32, #tpu.memory_space<vmem>>, vector<1x64xf32>
    %306 = vector.broadcast %305 : vector<1x64xf32> to vector<16x64xf32>
    %307 = arith.addf %304, %306 : vector<16x64xf32>
    %cst_169 = arith.constant 0.000000e+00 : f32
    %308 = vector.broadcast %cst_169 : f32 to vector<16x64xf32>
    %309 = arith.maximumf %307, %308 : vector<16x64xf32>
    %310 = arith.truncf %309 : vector<16x64xf32> to vector<16x64xbf16>
    %c192 = arith.constant 192 : index
    %c0_170 = arith.constant 0 : index
    %311 = vector.load %arg3[%c192, %c0_170] : memref<256x64xbf16, #tpu.memory_space<vmem>>, vector<64x32xbf16>
    %cst_171 = arith.constant dense<0.000000e+00> : vector<16x32xf32>
    %312 = tpu.matmul %310, %311, %cst_171 {dimension_numbers = #tpu.dot_dimension_numbers<[1], [0], [0], [1], [0, 0, 1, 1], [], []>} : vector<16x64xbf16>, vector<64x32xbf16>, vector<16x32xf32> -> vector<16x32xf32>
    %c7 = arith.constant 7 : index
    %c0_172 = arith.constant 0 : index
    %313 = vector.load %arg4[%c7, %c0_172] : memref<10x64xf32, #tpu.memory_space<vmem>>, vector<1x32xf32>
    %314 = vector.broadcast %313 : vector<1x32xf32> to vector<16x32xf32>
    %315 = arith.addf %312, %314 : vector<16x32xf32>
    %316 = arith.addf %301, %315 : vector<16x32xf32>
    %cst_173 = arith.constant dense<0.000000e+00> : vector<16xf32>
    %317 = vector.multi_reduction <add>, %316, %cst_173 [1] : vector<16x32xf32> to vector<16xf32>
    %318 = vector.shape_cast %317 : vector<16xf32> to vector<16x1xf32>
    %cst_174 = arith.constant 3.200000e+01 : f32
    %319 = vector.broadcast %cst_174 : f32 to vector<16x1xf32>
    %320 = arith.divf %318, %319 : vector<16x1xf32>
    %321 = vector.broadcast %320 : vector<16x1xf32> to vector<16x32xf32>
    %322 = arith.subf %316, %321 : vector<16x32xf32>
    %323 = vector.broadcast %320 : vector<16x1xf32> to vector<16x32xf32>
    %324 = arith.subf %316, %323 : vector<16x32xf32>
    %325 = arith.mulf %322, %324 : vector<16x32xf32>
    %cst_175 = arith.constant dense<0.000000e+00> : vector<16xf32>
    %326 = vector.multi_reduction <add>, %325, %cst_175 [1] : vector<16x32xf32> to vector<16xf32>
    %327 = vector.shape_cast %326 : vector<16xf32> to vector<16x1xf32>
    %cst_176 = arith.constant 3.200000e+01 : f32
    %328 = vector.broadcast %cst_176 : f32 to vector<16x1xf32>
    %329 = arith.divf %327, %328 : vector<16x1xf32>
    %330 = vector.broadcast %320 : vector<16x1xf32> to vector<16x32xf32>
    %331 = arith.subf %316, %330 : vector<16x32xf32>
    %cst_177 = arith.constant 9.99999974E-6 : f32
    %332 = vector.broadcast %cst_177 : f32 to vector<16x1xf32>
    %333 = arith.addf %329, %332 : vector<16x1xf32>
    %334 = math.rsqrt %333 : vector<16x1xf32>
    %335 = vector.broadcast %334 : vector<16x1xf32> to vector<16x32xf32>
    %336 = arith.mulf %331, %335 : vector<16x32xf32>
    %c8_178 = arith.constant 8 : index
    %c0_179 = arith.constant 0 : index
    %337 = vector.load %arg4[%c8_178, %c0_179] : memref<10x64xf32, #tpu.memory_space<vmem>>, vector<1x32xf32>
    %338 = vector.broadcast %337 : vector<1x32xf32> to vector<16x32xf32>
    %339 = arith.mulf %336, %338 : vector<16x32xf32>
    %c9 = arith.constant 9 : index
    %c0_180 = arith.constant 0 : index
    %340 = vector.load %arg4[%c9, %c0_180] : memref<10x64xf32, #tpu.memory_space<vmem>>, vector<1x32xf32>
    %341 = vector.broadcast %340 : vector<1x32xf32> to vector<16x32xf32>
    %342 = arith.addf %339, %341 : vector<16x32xf32>
    %c0_181 = arith.constant 0 : index
    %c0_182 = arith.constant 0 : index
    %343 = vector.load %arg5[%c0_181, %c0_182] : memref<16x32xf32, #tpu.memory_space<vmem>>, vector<16x32xf32>
    tpu.vector_store %arg5[%c0_181, %c0_182], %342 {strides = array<i32>} : memref<16x32xf32, #tpu.memory_space<vmem>>, vector<16x32xf32>,
    return
  }
  func.func @transform_0(%arg0: i32) -> (i32, i32, i32) {
    %c0_i32 = arith.constant 0 : i32
    %c0_i32_0 = arith.constant 0 : i32
    %c0_i32_1 = arith.constant 0 : i32
    %c0_i32_2 = arith.constant 0 : i32
    return %c0_i32, %c0_i32_0, %c0_i32_1 : i32, i32, i32
  }
  func.func @transform_1(%arg0: i32) -> (i32, i32, i32, i32) {
    %c0_i32 = arith.constant 0 : i32
    %c0_i32_0 = arith.constant 0 : i32
    %c0_i32_1 = arith.constant 0 : i32
    %c0_i32_2 = arith.constant 0 : i32
    %c0_i32_3 = arith.constant 0 : i32
    return %c0_i32, %c0_i32_0, %c0_i32_1, %c0_i32_2 : i32, i32, i32, i32
  }
  func.func @transform_2(%arg0: i32) -> (i32, i32) {
    %c0_i32 = arith.constant 0 : i32
    %c0_i32_0 = arith.constant 0 : i32
    %c0_i32_1 = arith.constant 0 : i32
    return %c0_i32, %c0_i32_0 : i32, i32
  }
  func.func @transform_3(%arg0: i32) -> (i32, i32) {
    %c0_i32 = arith.constant 0 : i32
    %c0_i32_0 = arith.constant 0 : i32
    %c0_i32_1 = arith.constant 0 : i32
    return %c0_i32, %c0_i32_0 : i32, i32
  }
  func.func @transform_4(%arg0: i32) -> (i32, i32) {
    %c0_i32 = arith.constant 0 : i32
    %c0_i32_0 = arith.constant 0 : i32
    %c0_i32_1 = arith.constant 0 : i32
    return %c0_i32, %c0_i32_0 : i32, i32
  }
}

</mosaic_0001>

<llo_original>
// kernel: tpu_custom_call.1
$region0: #{tpu_custom_call.1}
  #allocation0 [shape = 'u32[]', space=smem, size = 0x4, offset = 0x4, fixed_abs, tag = 'smem constant byte address 0x4 - core index']
  #allocation1 [shape = 'u32[144,128]{1,0:T(1,128)}', space=vmem, size = 0x12000, scoped, tag = 'internal scratch']
  #allocation2 [shape = 'f32[16,64]{1,0:T(8,128)}', space=vmem, size = 0x2000, scoped, tag = 'scratch operand']
  %s0 = inlined_call_operand.vmem [shape: f32[4,16,32], index: 0, kind: input, shape index: {}]
  %s1 = inlined_call_operand.vmem [shape: f32[2,5,8,8], index: 1, kind: input, shape index: {}]
  %s2 = inlined_call_operand.vmem [shape: bf16[256,64], index: 2, kind: input, shape index: {}]
  %s3 = inlined_call_operand.vmem [shape: f32[10,64], index: 3, kind: input, shape index: {}]
  %s4 = inlined_call_operand.hbm [shape: f32[16,32], index: 4, kind: output, shape index: {}]
  %s5 = sld [smem:[#allocation0]]
  $region26: #{tpu_custom_call.1} parent=0
    _
  %s7 = ssub.s32 1, %s5
  %s8 = scalar_select 0, %s7, %s5
  $region1: #{tpu_custom_call.1} parent=0
    #allocation3 [shape = 'u8[8192]{0}', space=vmem, size = 0x2000, scoped, tag = 'output window, operand 0, single buffered']
    #allocation4 [shape = 's32[1]{0}', space=sflag, size = 0x4, scoped, tag = 'scoped memory for tpu_custom_call.1']
    %9 = vsyncpa [#allocation4], 0
    // Predicated region
    $region2: #{tpu_custom_call.1} parent=1 // pred_check
      _
    $region3: #{tpu_custom_call.1} parent=1 // pred_check_branch
      %11 = sbr.rel (0) target = $region5
    $region4: #{tpu_custom_call.1} parent=1 // pred_region
      _
    $region5: #{tpu_custom_call.1} parent=1 // pred_fallthru
      _
    // Predicated region
    $region6: #{tpu_custom_call.1} parent=1 // pred_check
      _
    $region7: #{tpu_custom_call.1} parent=1 // pred_check_branch
      %13 = sbr.rel (0) target = $region9
    $region8: #{tpu_custom_call.1} parent=1 // pred_region
      _
    $region9: #{tpu_custom_call.1} parent=1 // pred_fallthru
      _
    // Predicated region
    $region10: #{tpu_custom_call.1} parent=1 // pred_check
      _
    $region11: #{tpu_custom_call.1} parent=1 // pred_check_branch
      %15 = sbr.rel (0) target = $region13
    $region12: #{tpu_custom_call.1} parent=1 // pred_region
      _
    $region13: #{tpu_custom_call.1} parent=1 // pred_fallthru
      _
    // Predicated region
    $region14: #{tpu_custom_call.1} parent=1 // pred_check
      _
    $region15: #{tpu_custom_call.1} parent=1 // pred_check_branch
      %17 = sbr.rel (0) target = $region17
    $region16: #{tpu_custom_call.1} parent=1 // pred_region
      _
    $region17: #{tpu_custom_call.1} parent=1 // pred_fallthru
      _
    %v19 = vld [vmem:[%s0] sm:$0xff]
    %v20 = vld [vmem:[%s0 + $0x8] sm:$0xff]
    %s21 = scalar_lea.vmem %s0, 16
    %v22 = vld [vmem:[%s21] sm:$0xff]
    %v23 = vld [vmem:[%s21 + $0x8] sm:$0xff]
    %s24 = scalar_lea.vmem %s0, 32
    %v25 = vld [vmem:[%s24] sm:$0xff]
    %v26 = vld [vmem:[%s24 + $0x8] sm:$0xff]
    %s27 = scalar_lea.vmem %s0, 48
    %v28 = vld [vmem:[%s27] sm:$0xff]
    %v29 = vld [vmem:[%s27 + $0x8] sm:$0xff]
    %v30 = vadd.f32 %v19, %v28
    %v31 = vadd.f32 %v20, %v29
    %v32 = vpack.c.bf16 %v31, %v30
    %v33 = vadd.f32 %v22, %v28
    %v34 = vadd.f32 %v23, %v29
    %v35 = vpack.c.bf16 %v34, %v33
    %v36 = vadd.f32 %v25, %v28
    %v37 = vadd.f32 %v26, %v29
    %v38 = vpack.c.bf16 %v37, %v36
    %v39 = vld [vmem:[%s2] sm:$0xf]
    %v40 = vld [vmem:[%s2 + $0x4] sm:$0xf]
    %v41 = vld [vmem:[%s2 + $0x8] sm:$0xf]
    %v42 = vld [vmem:[%s2 + $0xc] sm:$0xf]
    %v43 = vld [vmem:[%s3] sm:$0x1]
    %v44 = vlaneseq
    %v45 = vshrl.u32 %v44, 7
    %v46 = vsub.s32 0, %v45
    %v47 = vrot.slane %v43, %v46
    %v52 = vunpack.c.l.b16 %v39
    %v53 = vunpack.c.l.b16 %v40
    %v54 = vunpack.c.l.b16 %v41
    %v55 = vunpack.c.l.b16 %v42
    %v56 = vpack.c.b16 %v53, %v52
    %v57 = vpack.c.b16 %v55, %v54
    %vm60 = vcmask 261120
    %v62 = vsel %vm60, %v32, 0
    %64 = vmatprep.subr.bf16.mxu0 0
    %65 = vmatpush1.bf16.msra.mxu0 %v56
    %66 = vmatprep.subr.bf16.mxu0 0
    %67 = vmatpush1.bf16.msra.mxu0 %v57
    %68 = vmatprep.subr.bf16.mxu0 0
    %69 = vmatpush1.bf16.msra.mxu0 0
    %70 = vmatprep.subr.bf16.mxu0 0
    %71 = vmatpush1.bf16.msra.mxu0 0
    %72 = vmatprep.subr.bf16.mxu0 0
    %73 = vmatpush1.bf16.msra.mxu0 0
    %74 = vmatprep.subr.bf16.mxu0 0
    %75 = vmatpush1.bf16.msra.mxu0 0
    %76 = vmatprep.subr.bf16.mxu0 0
    %77 = vmatpush1.bf16.msra.mxu0 0
    %78 = vmatprep.subr.bf16.mxu0 0
    %79 = vmatpush1.bf16.msra.mxu0 0
    %80 = vmatprep.subr.bf16.mxu0 0
    %81 = vmatpush1.bf16.msra.mxu0 0
    %82 = vmatprep.subr.bf16.mxu0 0
    %83 = vmatpush1.bf16.msra.mxu0 0
    %84 = vmatprep.subr.bf16.mxu0 0
    %85 = vmatpush1.bf16.msra.mxu0 0
    %86 = vmatprep.subr.bf16.mxu0 0
    %87 = vmatpush1.bf16.msra.mxu0 0
    %88 = vmatprep.subr.bf16.mxu0 0
    %89 = vmatpush1.bf16.msra.mxu0 0
    %90 = vmatprep.subr.bf16.mxu0 0
    %91 = vmatpush1.bf16.msra.mxu0 0
    %92 = vmatprep.subr.bf16.mxu0 0
    %93 = vmatpush1.bf16.msra.mxu0 0
    %94 = vmatprep.subr.bf16.mxu0 0
    %95 = vmatpush1.bf16.msra.mxu0 0
    %96 = vmatprep.mubr.bf16.mxu0 0
    %97 = vmatmul.mubr.bf16.gmra.mrb[0].mxu0 %v62
    %v98 = vpop.f32.mrb[0].mxu0
    %v99 = vadd.f32 %v47, %v98
    %v100 = vpop.f32.mrb[0].mxu0
    %v101 = vpop.f32.mrb[0].mxu0
    %v102 = vadd.f32 %v47, %v101
    %v103 = vpop.f32.mrb[0].mxu0
    %104 = vdwg.mxu0
    %v105 = vld [vmem:[%s2 + $0x10] sm:$0xf]
    %v106 = vld [vmem:[%s2 + $0x14] sm:$0xf]
    %v107 = vld [vmem:[%s2 + $0x18] sm:$0xf]
    %v108 = vld [vmem:[%s2 + $0x1c] sm:$0xf]
    %v109 = vld [vmem:[%s3 + $0x1] sm:$0x1]
    %v110 = vlaneseq
    %v111 = vshrl.u32 %v110, 7
    %v112 = vsub.s32 0, %v111
    %v113 = vrot.slane %v109, %v112
    %v118 = vunpack.c.l.b16 %v105
    %v119 = vunpack.c.l.b16 %v106
    %v120 = vunpack.c.l.b16 %v107
    %v121 = vunpack.c.l.b16 %v108
    %v122 = vpack.c.b16 %v119, %v118
    %v123 = vpack.c.b16 %v121, %v120
    %v127 = vsel %vm60, %v35, 0
    %129 = vmatprep.subr.bf16.mxu0 0
    %130 = vmatpush1.bf16.msra.mxu0 %v122
    %131 = vmatprep.subr.bf16.mxu0 0
    %132 = vmatpush1.bf16.msra.mxu0 %v123
    %133 = vmatprep.subr.bf16.mxu0 0
    %134 = vmatpush1.bf16.msra.mxu0 0
    %135 = vmatprep.subr.bf16.mxu0 0
    %136 = vmatpush1.bf16.msra.mxu0 0
    %137 = vmatprep.subr.bf16.mxu0 0
    %138 = vmatpush1.bf16.msra.mxu0 0
    %139 = vmatprep.subr.bf16.mxu0 0
    %140 = vmatpush1.bf16.msra.mxu0 0
    %141 = vmatprep.subr.bf16.mxu0 0
    %142 = vmatpush1.bf16.msra.mxu0 0
    %143 = vmatprep.subr.bf16.mxu0 0
    %144 = vmatpush1.bf16.msra.mxu0 0
    %145 = vmatprep.subr.bf16.mxu0 0
    %146 = vmatpush1.bf16.msra.mxu0 0
    %147 = vmatprep.subr.bf16.mxu0 0
    %148 = vmatpush1.bf16.msra.mxu0 0
    %149 = vmatprep.subr.bf16.mxu0 0
    %150 = vmatpush1.bf16.msra.mxu0 0
    %151 = vmatprep.subr.bf16.mxu0 0
    %152 = vmatpush1.bf16.msra.mxu0 0
    %153 = vmatprep.subr.bf16.mxu0 0
    %154 = vmatpush1.bf16.msra.mxu0 0
    %155 = vmatprep.subr.bf16.mxu0 0
    %156 = vmatpush1.bf16.msra.mxu0 0
    %157 = vmatprep.subr.bf16.mxu0 0
    %158 = vmatpush1.bf16.msra.mxu0 0
    %159 = vmatprep.subr.bf16.mxu0 0
    %160 = vmatpush1.bf16.msra.mxu0 0
    %161 = vmatprep.mubr.bf16.mxu0 0
    %162 = vmatmul.mubr.bf16.gmra.mrb[0].mxu0 %v127
    %v163 = vpop.f32.mrb[0].mxu0
    %v164 = vadd.f32 %v113, %v163
    %v165 = vpop.f32.mrb[0].mxu0
    %v166 = vpop.f32.mrb[0].mxu0
    %v167 = vadd.f32 %v113, %v166
    %v168 = vpop.f32.mrb[0].mxu0
    %169 = vdwg.mxu0
    %v170 = vld [vmem:[%s2 + $0x20] sm:$0xf]
    %v171 = vld [vmem:[%s2 + $0x24] sm:$0xf]
    %v172 = vld [vmem:[%s2 + $0x28] sm:$0xf]
    %v173 = vld [vmem:[%s2 + $0x2c] sm:$0xf]
    %v174 = vld [vmem:[%s3 + $0x2] sm:$0x1]
    %v175 = vlaneseq
    %v176 = vshrl.u32 %v175, 7
    %v177 = vsub.s32 0, %v176
    %v178 = vrot.slane %v174, %v177
    %v183 = vunpack.c.l.b16 %v170
    %v184 = vunpack.c.l.b16 %v171
    %v185 = vunpack.c.l.b16 %v172
    %v186 = vunpack.c.l.b16 %v173
    %v187 = vpack.c.b16 %v184, %v183
    %v188 = vpack.c.b16 %v186, %v185
    %v192 = vsel %vm60, %v38, 0
    %194 = vmatprep.subr.bf16.mxu0 0
    %195 = vmatpush1.bf16.msra.mxu0 %v187
    %196 = vmatprep.subr.bf16.mxu0 0
    %197 = vmatpush1.bf16.msra.mxu0 %v188
    %198 = vmatprep.subr.bf16.mxu0 0
    %199 = vmatpush1.bf16.msra.mxu0 0
    %200 = vmatprep.subr.bf16.mxu0 0
    %201 = vmatpush1.bf16.msra.mxu0 0
    %202 = vmatprep.subr.bf16.mxu0 0
    %203 = vmatpush1.bf16.msra.mxu0 0
    %204 = vmatprep.subr.bf16.mxu0 0
    %205 = vmatpush1.bf16.msra.mxu0 0
    %206 = vmatprep.subr.bf16.mxu0 0
    %207 = vmatpush1.bf16.msra.mxu0 0
    %208 = vmatprep.subr.bf16.mxu0 0
    %209 = vmatpush1.bf16.msra.mxu0 0
    %210 = vmatprep.subr.bf16.mxu0 0
    %211 = vmatpush1.bf16.msra.mxu0 0
    %212 = vmatprep.subr.bf16.mxu0 0
    %213 = vmatpush1.bf16.msra.mxu0 0
    %214 = vmatprep.subr.bf16.mxu0 0
    %215 = vmatpush1.bf16.msra.mxu0 0
    %216 = vmatprep.subr.bf16.mxu0 0
    %217 = vmatpush1.bf16.msra.mxu0 0
    %218 = vmatprep.subr.bf16.mxu0 0
    %219 = vmatpush1.bf16.msra.mxu0 0
    %220 = vmatprep.subr.bf16.mxu0 0
    %221 = vmatpush1.bf16.msra.mxu0 0
    %222 = vmatprep.subr.bf16.mxu0 0
    %223 = vmatpush1.bf16.msra.mxu0 0
    %224 = vmatprep.subr.bf16.mxu0 0
    %225 = vmatpush1.bf16.msra.mxu0 0
    %226 = vmatprep.mubr.bf16.mxu0 0
    %227 = vmatmul.mubr.bf16.gmra.mrb[0].mxu0 %v192
    %v228 = vpop.f32.mrb[0].mxu0
    %v229 = vadd.f32 %v178, %v228
    %v230 = vpop.f32.mrb[0].mxu0
    %v231 = vpop.f32.mrb[0].mxu0
    %v232 = vadd.f32 %v178, %v231
    %v233 = vpop.f32.mrb[0].mxu0
    %234 = vdwg.mxu0
    %v235 = vpack.c.bf16 %v102, %v99
    %v236 = vpack.c.bf16 %v167, %v164
    %v237 = vpack.c.bf16 %v232, %v229
    %v238 = vld [vmem:[%s1] sm:$0xff]
    %s239 = scalar_lea.vmem %s1, 32
    %v240 = vld [vmem:[%s239] sm:$0xff]
    %v241 = vmax.f32 %v238, 1e-06
    %v242 = vlog2.pop %v241
    %v243 = vmul.f32 %v242, 0.6931472
    %vm244 = vcmask 130048
    %v246 = vsel %vm244, %v235, 0
    %v249 = vsel %vm244, %v236, 0
    %251 = vmatprep.subr.bf16.mxu0 0
    %252 = vmatpush1.bf16.xpose.msra.mxu0 %v249
    %253 = vmatprep.subr.bf16.mxu0 0
    %254 = vmatpush1.bf16.xpose.msra.mxu0 0
    %255 = vmatprep.subr.bf16.mxu0 0
    %256 = vmatpush1.bf16.xpose.msra.mxu0 0
    %257 = vmatprep.subr.bf16.mxu0 0
    %258 = vmatpush1.bf16.xpose.msra.mxu0 0
    %259 = vmatprep.subr.bf16.mxu0 0
    %260 = vmatpush1.bf16.xpose.msra.mxu0 0
    %261 = vmatprep.subr.bf16.mxu0 0
    %262 = vmatpush1.bf16.xpose.msra.mxu0 0
    %263 = vmatprep.subr.bf16.mxu0 0
    %264 = vmatpush1.bf16.xpose.msra.mxu0 0
    %265 = vmatprep.subr.bf16.mxu0 0
    %266 = vmatpush1.bf16.xpose.msra.mxu0 0
    %267 = vmatprep.subr.bf16.mxu0 0
    %268 = vmatpush1.bf16.xpose.msra.mxu0 0
    %269 = vmatprep.subr.bf16.mxu0 0
    %270 = vmatpush1.bf16.xpose.msra.mxu0 0
    %271 = vmatprep.subr.bf16.mxu0 0
    %272 = vmatpush1.bf16.xpose.msra.mxu0 0
    %273 = vmatprep.subr.bf16.mxu0 0
    %274 = vmatpush1.bf16.xpose.msra.mxu0 0
    %275 = vmatprep.subr.bf16.mxu0 0
    %276 = vmatpush1.bf16.xpose.msra.mxu0 0
    %277 = vmatprep.subr.bf16.mxu0 0
    %278 = vmatpush1.bf16.xpose.msra.mxu0 0
    %279 = vmatprep.subr.bf16.mxu0 0
    %280 = vmatpush1.bf16.xpose.msra.mxu0 0
    %281 = vmatprep.subr.bf16.mxu0 0
    %282 = vmatpush1.bf16.xpose.msra.mxu0 0
    %283 = vmatprep.mubr.bf16.mxu0 0
    %284 = vmatmul.mubr.bf16.gmra.mrb[0].mxu0 %v246
    %v285 = vpop.f32.mrb[0].mxu0
    %v286 = vadd.f32 %v243, %v285
    %v287 = vpop.f32.mrb[0].mxu0
    %v288 = vpop.f32.mrb[0].mxu0
    %v289 = vpop.f32.mrb[0].mxu0
    %290 = vdwg.mxu0
    %vm291 = vcmp.gt.f32.partialorder %v240, 0.0
    %v292 = vsel %vm291, -1e+09, %v286
    %vm293 = vcmask 64512
    %v294 = vsel %vm293, %v292, -inf
    %295 = vmax.xlane.f32.xlu0 %v294
    %v296 = vpop.xlane.xlu0 %295
    %v297 = vsub.f32 %v292, %v296
    %v298 = vmul.f32 %v297, 1.442695
    %v299 = vpow.pop %v298
    %v300 = vsel %vm293, %v299, 0.0
    %301 = vadd.xlane.f32.xlu0 %v300
    %v302 = vpop.xlane.xlu0 %301
    %v303 = vrcp.pop %v302
    %v304 = vmul.f32 %v299, %v303
    %v305 = vpack.c.bf16 %v304, %v304
    %v307 = vsel %vm293, %v305, 0
    %vm309 = vcmask 1043456
    %v311 = vsel %vm309, %v237, 0
    %313 = vmatprep.subr.bf16.mxu0 0
    %314 = vmatpush1.bf16.msra.mxu0 %v311
    %315 = vmatprep.subr.bf16.mxu0 0
    %316 = vmatpush1.bf16.msra.mxu0 0
    %317 = vmatprep.subr.bf16.mxu0 0
    %318 = vmatpush1.bf16.msra.mxu0 0
    %319 = vmatprep.subr.bf16.mxu0 0
    %320 = vmatpush1.bf16.msra.mxu0 0
    %321 = vmatprep.subr.bf16.mxu0 0
    %322 = vmatpush1.bf16.msra.mxu0 0
    %323 = vmatprep.subr.bf16.mxu0 0
    %324 = vmatpush1.bf16.msra.mxu0 0
    %325 = vmatprep.subr.bf16.mxu0 0
    %326 = vmatpush1.bf16.msra.mxu0 0
    %327 = vmatprep.subr.bf16.mxu0 0
    %328 = vmatpush1.bf16.msra.mxu0 0
    %329 = vmatprep.subr.bf16.mxu0 0
    %330 = vmatpush1.bf16.msra.mxu0 0
    %331 = vmatprep.subr.bf16.mxu0 0
    %332 = vmatpush1.bf16.msra.mxu0 0
    %333 = vmatprep.subr.bf16.mxu0 0
    %334 = vmatpush1.bf16.msra.mxu0 0
    %335 = vmatprep.subr.bf16.mxu0 0
    %336 = vmatpush1.bf16.msra.mxu0 0
    %337 = vmatprep.subr.bf16.mxu0 0
    %338 = vmatpush1.bf16.msra.mxu0 0
    %339 = vmatprep.subr.bf16.mxu0 0
    %340 = vmatpush1.bf16.msra.mxu0 0
    %341 = vmatprep.subr.bf16.mxu0 0
    %342 = vmatpush1.bf16.msra.mxu0 0
    %343 = vmatprep.subr.bf16.mxu0 0
    %344 = vmatpush1.bf16.msra.mxu0 0
    %345 = vmatprep.mubr.bf16.mxu0 0
    %346 = vmatmul.mubr.bf16.gmra.mrb[0].mxu0 %v307
    %v347 = vpop.f32.mrb[0].mxu0
    %v348 = vadd.f32 0.0, %v347
    %v349 = vpop.f32.mrb[0].mxu0
    %v350 = vpop.f32.mrb[0].mxu0
    %v351 = vpop.f32.mrb[0].mxu0
    %352 = vdwg.mxu0
    %353 = vst.msk [vmem:[#allocation2] sm:$0xff] %vm244, %v348
    %s354 = scalar_lea.vmem %s1, 40
    %v355 = vld [vmem:[%s354] sm:$0xff]
    %s356 = scalar_lea.vmem %s1, 72
    %v357 = vld [vmem:[%s356] sm:$0xff]
    %v358 = vmax.f32 %v355, 1e-06
    %v359 = vlog2.pop %v358
    %v360 = vmul.f32 %v359, 0.6931472
    %v362 = vrot.slane %v235, 4
    %v364 = vrot.slane %v236, 4
    %v366 = vsel %vm244, %v362, 0
    %v369 = vsel %vm244, %v364, 0
    %371 = vmatprep.subr.bf16.mxu0 0
    %372 = vmatpush1.bf16.xpose.msra.mxu0 %v369
    %373 = vmatprep.subr.bf16.mxu0 0
    %374 = vmatpush1.bf16.xpose.msra.mxu0 0
    %375 = vmatprep.subr.bf16.mxu0 0
    %376 = vmatpush1.bf16.xpose.msra.mxu0 0
    %377 = vmatprep.subr.bf16.mxu0 0
    %378 = vmatpush1.bf16.xpose.msra.mxu0 0
    %379 = vmatprep.subr.bf16.mxu0 0
    %380 = vmatpush1.bf16.xpose.msra.mxu0 0
    %381 = vmatprep.subr.bf16.mxu0 0
    %382 = vmatpush1.bf16.xpose.msra.mxu0 0
    %383 = vmatprep.subr.bf16.mxu0 0
    %384 = vmatpush1.bf16.xpose.msra.mxu0 0
    %385 = vmatprep.subr.bf16.mxu0 0
    %386 = vmatpush1.bf16.xpose.msra.mxu0 0
    %387 = vmatprep.subr.bf16.mxu0 0
    %388 = vmatpush1.bf16.xpose.msra.mxu0 0
    %389 = vmatprep.subr.bf16.mxu0 0
    %390 = vmatpush1.bf16.xpose.msra.mxu0 0
    %391 = vmatprep.subr.bf16.mxu0 0
    %392 = vmatpush1.bf16.xpose.msra.mxu0 0
    %393 = vmatprep.subr.bf16.mxu0 0
    %394 = vmatpush1.bf16.xpose.msra.mxu0 0
    %395 = vmatprep.subr.bf16.mxu0 0
    %396 = vmatpush1.bf16.xpose.msra.mxu0 0
    %397 = vmatprep.subr.bf16.mxu0 0
    %398 = vmatpush1.bf16.xpose.msra.mxu0 0
    %399 = vmatprep.subr.bf16.mxu0 0
    %400 = vmatpush1.bf16.xpose.msra.mxu0 0
    %401 = vmatprep.subr.bf16.mxu0 0
    %402 = vmatpush1.bf16.xpose.msra.mxu0 0
    %403 = vmatprep.mubr.bf16.mxu0 0
    %404 = vmatmul.mubr.bf16.gmra.mrb[0].mxu0 %v366
    %v405 = vpop.f32.mrb[0].mxu0
    %v406 = vadd.f32 %v360, %v405
    %v407 = vpop.f32.mrb[0].mxu0
    %v408 = vpop.f32.mrb[0].mxu0
    %v409 = vpop.f32.mrb[0].mxu0
    %410 = vdwg.mxu0
    %vm411 = vcmp.gt.f32.partialorder %v357, 0.0
    %v412 = vsel %vm411, -1e+09, %v406
    %v413 = vsel %vm293, %v412, -inf
    %414 = vmax.xlane.f32.xlu0 %v413
    %v415 = vpop.xlane.xlu0 %414
    %v416 = vsub.f32 %v412, %v415
    %v417 = vmul.f32 %v416, 1.442695
    %v418 = vpow.pop %v417
    %v419 = vsel %vm293, %v418, 0.0
    %420 = vadd.xlane.f32.xlu0 %v419
    %v421 = vpop.xlane.xlu0 %420
    %v422 = vrcp.pop %v421
    %v423 = vmul.f32 %v418, %v422
    %v424 = vpack.c.bf16 %v423, %v423
    %v426 = vrot.slane %v237, 4
    %v428 = vsel %vm293, %v424, 0
    %v431 = vsel %vm309, %v426, 0
    %433 = vmatprep.subr.bf16.mxu0 0
    %434 = vmatpush1.bf16.msra.mxu0 %v431
    %435 = vmatprep.subr.bf16.mxu0 0
    %436 = vmatpush1.bf16.msra.mxu0 0
    %437 = vmatprep.subr.bf16.mxu0 0
    %438 = vmatpush1.bf16.msra.mxu0 0
    %439 = vmatprep.subr.bf16.mxu0 0
    %440 = vmatpush1.bf16.msra.mxu0 0
    %441 = vmatprep.subr.bf16.mxu0 0
    %442 = vmatpush1.bf16.msra.mxu0 0
    %443 = vmatprep.subr.bf16.mxu0 0
    %444 = vmatpush1.bf16.msra.mxu0 0
    %445 = vmatprep.subr.bf16.mxu0 0
    %446 = vmatpush1.bf16.msra.mxu0 0
    %447 = vmatprep.subr.bf16.mxu0 0
    %448 = vmatpush1.bf16.msra.mxu0 0
    %449 = vmatprep.subr.bf16.mxu0 0
    %450 = vmatpush1.bf16.msra.mxu0 0
    %451 = vmatprep.subr.bf16.mxu0 0
    %452 = vmatpush1.bf16.msra.mxu0 0
    %453 = vmatprep.subr.bf16.mxu0 0
    %454 = vmatpush1.bf16.msra.mxu0 0
    %455 = vmatprep.subr.bf16.mxu0 0
    %456 = vmatpush1.bf16.msra.mxu0 0
    %457 = vmatprep.subr.bf16.mxu0 0
    %458 = vmatpush1.bf16.msra.mxu0 0
    %459 = vmatprep.subr.bf16.mxu0 0
    %460 = vmatpush1.bf16.msra.mxu0 0
    %461 = vmatprep.subr.bf16.mxu0 0
    %462 = vmatpush1.bf16.msra.mxu0 0
    %463 = vmatprep.subr.bf16.mxu0 0
    %464 = vmatpush1.bf16.msra.mxu0 0
    %465 = vmatprep.mubr.bf16.mxu0 0
    %466 = vmatmul.mubr.bf16.gmra.mrb[0].mxu0 %v428
    %v467 = vpop.f32.mrb[0].mxu0
    %v468 = vadd.f32 0.0, %v467
    %v469 = vpop.f32.mrb[0].mxu0
    %v470 = vpop.f32.mrb[0].mxu0
    %v471 = vpop.f32.mrb[0].mxu0
    %472 = vdwg.mxu0
    %473 = vst.msk [vmem:[#allocation2 + $0x8] sm:$0xff] %vm244, %v468
    %s474 = scalar_lea.vmem %s1, 8
    %v475 = vld [vmem:[%s474] sm:$0xff]
    %v476 = vld [vmem:[%s239] sm:$0xff]
    %v477 = vmax.f32 %v475, 1e-06
    %v478 = vlog2.pop %v477
    %v479 = vmul.f32 %v478, 0.6931472
    %480 = vrot.lane.b32.xlu0 %v235, 112
    %v481 = vpop.permute.xlu0 %480
    %482 = vrot.lane.b32.xlu0 %v236, 112
    %v483 = vpop.permute.xlu0 %482
    %v485 = vsel %vm244, %v481, 0
    %v488 = vsel %vm244, %v483, 0
    %490 = vmatprep.subr.bf16.mxu0 0
    %491 = vmatpush1.bf16.xpose.msra.mxu0 %v488
    %492 = vmatprep.subr.bf16.mxu0 0
    %493 = vmatpush1.bf16.xpose.msra.mxu0 0
    %494 = vmatprep.subr.bf16.mxu0 0
    %495 = vmatpush1.bf16.xpose.msra.mxu0 0
    %496 = vmatprep.subr.bf16.mxu0 0
    %497 = vmatpush1.bf16.xpose.msra.mxu0 0
    %498 = vmatprep.subr.bf16.mxu0 0
    %499 = vmatpush1.bf16.xpose.msra.mxu0 0
    %500 = vmatprep.subr.bf16.mxu0 0
    %501 = vmatpush1.bf16.xpose.msra.mxu0 0
    %502 = vmatprep.subr.bf16.mxu0 0
    %503 = vmatpush1.bf16.xpose.msra.mxu0 0
    %504 = vmatprep.subr.bf16.mxu0 0
    %505 = vmatpush1.bf16.xpose.msra.mxu0 0
    %506 = vmatprep.subr.bf16.mxu0 0
    %507 = vmatpush1.bf16.xpose.msra.mxu0 0
    %508 = vmatprep.subr.bf16.mxu0 0
    %509 = vmatpush1.bf16.xpose.msra.mxu0 0
    %510 = vmatprep.subr.bf16.mxu0 0
    %511 = vmatpush1.bf16.xpose.msra.mxu0 0
    %512 = vmatprep.subr.bf16.mxu0 0
    %513 = vmatpush1.bf16.xpose.msra.mxu0 0
    %514 = vmatprep.subr.bf16.mxu0 0
    %515 = vmatpush1.bf16.xpose.msra.mxu0 0
    %516 = vmatprep.subr.bf16.mxu0 0
    %517 = vmatpush1.bf16.xpose.msra.mxu0 0
    %518 = vmatprep.subr.bf16.mxu0 0
    %519 = vmatpush1.bf16.xpose.msra.mxu0 0
    %520 = vmatprep.subr.bf16.mxu0 0
    %521 = vmatpush1.bf16.xpose.msra.mxu0 0
    %522 = vmatprep.mubr.bf16.mxu0 0
    %523 = vmatmul.mubr.bf16.gmra.mrb[0].mxu0 %v485
    %v524 = vpop.f32.mrb[0].mxu0
    %v525 = vadd.f32 %v479, %v524
    %v526 = vpop.f32.mrb[0].mxu0
    %v527 = vpop.f32.mrb[0].mxu0
    %v528 = vpop.f32.mrb[0].mxu0
    %529 = vdwg.mxu0
    %vm530 = vcmp.gt.f32.partialorder %v476, 0.0
    %v531 = vsel %vm530, -1e+09, %v525
    %v532 = vsel %vm293, %v531, -inf
    %533 = vmax.xlane.f32.xlu0 %v532
    %v534 = vpop.xlane.xlu0 %533
    %v535 = vsub.f32 %v531, %v534
    %v536 = vmul.f32 %v535, 1.442695
    %v537 = vpow.pop %v536
    %v538 = vsel %vm293, %v537, 0.0
    %539 = vadd.xlane.f32.xlu0 %v538
    %v540 = vpop.xlane.xlu0 %539
    %v541 = vrcp.pop %v540
    %v542 = vmul.f32 %v537, %v541
    %v543 = vpack.c.bf16 %v542, %v542
    %544 = vrot.lane.b32.xlu0 %v237, 112
    %v545 = vpop.permute.xlu0 %544
    %v547 = vsel %vm293, %v543, 0
    %v550 = vsel %vm309, %v545, 0
    %552 = vmatprep.subr.bf16.mxu0 0
    %553 = vmatpush1.bf16.msra.mxu0 %v550
    %554 = vmatprep.subr.bf16.mxu0 0
    %555 = vmatpush1.bf16.msra.mxu0 0
    %556 = vmatprep.subr.bf16.mxu0 0
    %557 = vmatpush1.bf16.msra.mxu0 0
    %558 = vmatprep.subr.bf16.mxu0 0
    %559 = vmatpush1.bf16.msra.mxu0 0
    %560 = vmatprep.subr.bf16.mxu0 0
    %561 = vmatpush1.bf16.msra.mxu0 0
    %562 = vmatprep.subr.bf16.mxu0 0
    %563 = vmatpush1.bf16.msra.mxu0 0
    %564 = vmatprep.subr.bf16.mxu0 0
    %565 = vmatpush1.bf16.msra.mxu0 0
    %566 = vmatprep.subr.bf16.mxu0 0
    %567 = vmatpush1.bf16.msra.mxu0 0
    %568 = vmatprep.subr.bf16.mxu0 0
    %569 = vmatpush1.bf16.msra.mxu0 0
    %570 = vmatprep.subr.bf16.mxu0 0
    %571 = vmatpush1.bf16.msra.mxu0 0
    %572 = vmatprep.subr.bf16.mxu0 0
    %573 = vmatpush1.bf16.msra.mxu0 0
    %574 = vmatprep.subr.bf16.mxu0 0
    %575 = vmatpush1.bf16.msra.mxu0 0
    %576 = vmatprep.subr.bf16.mxu0 0
    %577 = vmatpush1.bf16.msra.mxu0 0
    %578 = vmatprep.subr.bf16.mxu0 0
    %579 = vmatpush1.bf16.msra.mxu0 0
    %580 = vmatprep.subr.bf16.mxu0 0
    %581 = vmatpush1.bf16.msra.mxu0 0
    %582 = vmatprep.subr.bf16.mxu0 0
    %583 = vmatpush1.bf16.msra.mxu0 0
    %584 = vmatprep.mubr.bf16.mxu0 0
    %585 = vmatmul.mubr.bf16.gmra.mrb[0].mxu0 %v547
    %v586 = vpop.f32.mrb[0].mxu0
    %v587 = vadd.f32 0.0, %v586
    %v588 = vpop.f32.mrb[0].mxu0
    %v589 = vpop.f32.mrb[0].mxu0
    %v590 = vpop.f32.mrb[0].mxu0
    %591 = vdwg.mxu0
    %593 = vrot.lane.b32.xlu0 %v587, 16
    %v594 = vpop.permute.xlu0 %593
    %vm596 = vcmask 261248
    %597 = vst.msk [vmem:[#allocation2] sm:$0xff] %vm596, %v594
    %s598 = scalar_lea.vmem %s1, 48
    %v599 = vld [vmem:[%s598] sm:$0xff]
    %v600 = vld [vmem:[%s356] sm:$0xff]
    %v601 = vmax.f32 %v599, 1e-06
    %v602 = vlog2.pop %v601
    %v603 = vmul.f32 %v602, 0.6931472
    %604 = vrot.lane.b32.xlu0 %v362, 112
    %v605 = vpop.permute.xlu0 %604
    %606 = vrot.lane.b32.xlu0 %v364, 112
    %v607 = vpop.permute.xlu0 %606
    %v609 = vsel %vm244, %v605, 0
    %v612 = vsel %vm244, %v607, 0
    %614 = vmatprep.subr.bf16.mxu0 0
    %615 = vmatpush1.bf16.xpose.msra.mxu0 %v612
    %616 = vmatprep.subr.bf16.mxu0 0
    %617 = vmatpush1.bf16.xpose.msra.mxu0 0
    %618 = vmatprep.subr.bf16.mxu0 0
    %619 = vmatpush1.bf16.xpose.msra.mxu0 0
    %620 = vmatprep.subr.bf16.mxu0 0
    %621 = vmatpush1.bf16.xpose.msra.mxu0 0
    %622 = vmatprep.subr.bf16.mxu0 0
    %623 = vmatpush1.bf16.xpose.msra.mxu0 0
    %624 = vmatprep.subr.bf16.mxu0 0
    %625 = vmatpush1.bf16.xpose.msra.mxu0 0
    %626 = vmatprep.subr.bf16.mxu0 0
    %627 = vmatpush1.bf16.xpose.msra.mxu0 0
    %628 = vmatprep.subr.bf16.mxu0 0
    %629 = vmatpush1.bf16.xpose.msra.mxu0 0
    %630 = vmatprep.subr.bf16.mxu0 0
    %631 = vmatpush1.bf16.xpose.msra.mxu0 0
    %632 = vmatprep.subr.bf16.mxu0 0
    %633 = vmatpush1.bf16.xpose.msra.mxu0 0
    %634 = vmatprep.subr.bf16.mxu0 0
    %635 = vmatpush1.bf16.xpose.msra.mxu0 0
    %636 = vmatprep.subr.bf16.mxu0 0
    %637 = vmatpush1.bf16.xpose.msra.mxu0 0
    %638 = vmatprep.subr.bf16.mxu0 0
    %639 = vmatpush1.bf16.xpose.msra.mxu0 0
    %640 = vmatprep.subr.bf16.mxu0 0
    %641 = vmatpush1.bf16.xpose.msra.mxu0 0
    %642 = vmatprep.subr.bf16.mxu0 0
    %643 = vmatpush1.bf16.xpose.msra.mxu0 0
    %644 = vmatprep.subr.bf16.mxu0 0
    %645 = vmatpush1.bf16.xpose.msra.mxu0 0
    %646 = vmatprep.mubr.bf16.mxu0 0
    %647 = vmatmul.mubr.bf16.gmra.mrb[0].mxu0 %v609
    %v648 = vpop.f32.mrb[0].mxu0
    %v649 = vadd.f32 %v603, %v648
    %v650 = vpop.f32.mrb[0].mxu0
    %v651 = vpop.f32.mrb[0].mxu0
    %v652 = vpop.f32.mrb[0].mxu0
    %653 = vdwg.mxu0
    %vm654 = vcmp.gt.f32.partialorder %v600, 0.0
    %v655 = vsel %vm654, -1e+09, %v649
    %v656 = vsel %vm293, %v655, -inf
    %657 = vmax.xlane.f32.xlu0 %v656
    %v658 = vpop.xlane.xlu0 %657
    %v659 = vsub.f32 %v655, %v658
    %v660 = vmul.f32 %v659, 1.442695
    %v661 = vpow.pop %v660
    %v662 = vsel %vm293, %v661, 0.0
    %663 = vadd.xlane.f32.xlu0 %v662
    %v664 = vpop.xlane.xlu0 %663
    %v665 = vrcp.pop %v664
    %v666 = vmul.f32 %v661, %v665
    %v667 = vpack.c.bf16 %v666, %v666
    %668 = vrot.lane.b32.xlu0 %v426, 112
    %v669 = vpop.permute.xlu0 %668
    %v671 = vsel %vm293, %v667, 0
    %v674 = vsel %vm309, %v669, 0
    %676 = vmatprep.subr.bf16.mxu0 0
    %677 = vmatpush1.bf16.msra.mxu0 %v674
    %678 = vmatprep.subr.bf16.mxu0 0
    %679 = vmatpush1.bf16.msra.mxu0 0
    %680 = vmatprep.subr.bf16.mxu0 0
    %681 = vmatpush1.bf16.msra.mxu0 0
    %682 = vmatprep.subr.bf16.mxu0 0
    %683 = vmatpush1.bf16.msra.mxu0 0
    %684 = vmatprep.subr.bf16.mxu0 0
    %685 = vmatpush1.bf16.msra.mxu0 0
    %686 = vmatprep.subr.bf16.mxu0 0
    %687 = vmatpush1.bf16.msra.mxu0 0
    %688 = vmatprep.subr.bf16.mxu0 0
    %689 = vmatpush1.bf16.msra.mxu0 0
    %690 = vmatprep.subr.bf16.mxu0 0
    %691 = vmatpush1.bf16.msra.mxu0 0
    %692 = vmatprep.subr.bf16.mxu0 0
    %693 = vmatpush1.bf16.msra.mxu0 0
    %694 = vmatprep.subr.bf16.mxu0 0
    %695 = vmatpush1.bf16.msra.mxu0 0
    %696 = vmatprep.subr.bf16.mxu0 0
    %697 = vmatpush1.bf16.msra.mxu0 0
    %698 = vmatprep.subr.bf16.mxu0 0
    %699 = vmatpush1.bf16.msra.mxu0 0
    %700 = vmatprep.subr.bf16.mxu0 0
    %701 = vmatpush1.bf16.msra.mxu0 0
    %702 = vmatprep.subr.bf16.mxu0 0
    %703 = vmatpush1.bf16.msra.mxu0 0
    %704 = vmatprep.subr.bf16.mxu0 0
    %705 = vmatpush1.bf16.msra.mxu0 0
    %706 = vmatprep.subr.bf16.mxu0 0
    %707 = vmatpush1.bf16.msra.mxu0 0
    %708 = vmatprep.mubr.bf16.mxu0 0
    %709 = vmatmul.mubr.bf16.gmra.mrb[0].mxu0 %v671
    %v710 = vpop.f32.mrb[0].mxu0
    %v711 = vadd.f32 0.0, %v710
    %v712 = vpop.f32.mrb[0].mxu0
    %v713 = vpop.f32.mrb[0].mxu0
    %v714 = vpop.f32.mrb[0].mxu0
    %715 = vdwg.mxu0
    %717 = vrot.lane.b32.xlu0 %v711, 16
    %v718 = vpop.permute.xlu0 %717
    %720 = vst.msk [vmem:[#allocation2 + $0x8] sm:$0xff] %vm596, %v718
    %s721 = scalar_lea.vmem %s1, 16
    %v722 = vld [vmem:[%s721] sm:$0xff]
    %v723 = vld [vmem:[%s239] sm:$0xff]
    %v724 = vmax.f32 %v722, 1e-06
    %v725 = vlog2.pop %v724
    %v726 = vmul.f32 %v725, 0.6931472
    %727 = vrot.lane.b32.xlu0 %v235, 96
    %v728 = vpop.permute.xlu0 %727
    %729 = vrot.lane.b32.xlu0 %v236, 96
    %v730 = vpop.permute.xlu0 %729
    %v732 = vsel %vm244, %v728, 0
    %v735 = vsel %vm244, %v730, 0
    %737 = vmatprep.subr.bf16.mxu0 0
    %738 = vmatpush1.bf16.xpose.msra.mxu0 %v735
    %739 = vmatprep.subr.bf16.mxu0 0
    %740 = vmatpush1.bf16.xpose.msra.mxu0 0
    %741 = vmatprep.subr.bf16.mxu0 0
    %742 = vmatpush1.bf16.xpose.msra.mxu0 0
    %743 = vmatprep.subr.bf16.mxu0 0
    %744 = vmatpush1.bf16.xpose.msra.mxu0 0
    %745 = vmatprep.subr.bf16.mxu0 0
    %746 = vmatpush1.bf16.xpose.msra.mxu0 0
    %747 = vmatprep.subr.bf16.mxu0 0
    %748 = vmatpush1.bf16.xpose.msra.mxu0 0
    %749 = vmatprep.subr.bf16.mxu0 0
    %750 = vmatpush1.bf16.xpose.msra.mxu0 0
    %751 = vmatprep.subr.bf16.mxu0 0
    %752 = vmatpush1.bf16.xpose.msra.mxu0 0
    %753 = vmatprep.subr.bf16.mxu0 0
    %754 = vmatpush1.bf16.xpose.msra.mxu0 0
    %755 = vmatprep.subr.bf16.mxu0 0
    %756 = vmatpush1.bf16.xpose.msra.mxu0 0
    %757 = vmatprep.subr.bf16.mxu0 0
    %758 = vmatpush1.bf16.xpose.msra.mxu0 0
    %759 = vmatprep.subr.bf16.mxu0 0
    %760 = vmatpush1.bf16.xpose.msra.mxu0 0
    %761 = vmatprep.subr.bf16.mxu0 0
    %762 = vmatpush1.bf16.xpose.msra.mxu0 0
    %763 = vmatprep.subr.bf16.mxu0 0
    %764 = vmatpush1.bf16.xpose.msra.mxu0 0
    %765 = vmatprep.subr.bf16.mxu0 0
    %766 = vmatpush1.bf16.xpose.msra.mxu0 0
    %767 = vmatprep.subr.bf16.mxu0 0
    %768 = vmatpush1.bf16.xpose.msra.mxu0 0
    %769 = vmatprep.mubr.bf16.mxu0 0
    %770 = vmatmul.mubr.bf16.gmra.mrb[0].mxu0 %v732
    %v771 = vpop.f32.mrb[0].mxu0
    %v772 = vadd.f32 %v726, %v771
    %v773 = vpop.f32.mrb[0].mxu0
    %v774 = vpop.f32.mrb[0].mxu0
    %v775 = vpop.f32.mrb[0].mxu0
    %776 = vdwg.mxu0
    %vm777 = vcmp.gt.f32.partialorder %v723, 0.0
    %v778 = vsel %vm777, -1e+09, %v772
    %v779 = vsel %vm293, %v778, -inf
    %780 = vmax.xlane.f32.xlu0 %v779
    %v781 = vpop.xlane.xlu0 %780
    %v782 = vsub.f32 %v778, %v781
    %v783 = vmul.f32 %v782, 1.442695
    %v784 = vpow.pop %v783
    %v785 = vsel %vm293, %v784, 0.0
    %786 = vadd.xlane.f32.xlu0 %v785
    %v787 = vpop.xlane.xlu0 %786
    %v788 = vrcp.pop %v787
    %v789 = vmul.f32 %v784, %v788
    %v790 = vpack.c.bf16 %v789, %v789
    %791 = vrot.lane.b32.xlu0 %v237, 96
    %v792 = vpop.permute.xlu0 %791
    %v794 = vsel %vm293, %v790, 0
    %v797 = vsel %vm309, %v792, 0
    %799 = vmatprep.subr.bf16.mxu0 0
    %800 = vmatpush1.bf16.msra.mxu0 %v797
    %801 = vmatprep.subr.bf16.mxu0 0
    %802 = vmatpush1.bf16.msra.mxu0 0
    %803 = vmatprep.subr.bf16.mxu0 0
    %804 = vmatpush1.bf16.msra.mxu0 0
    %805 = vmatprep.subr.bf16.mxu0 0
    %806 = vmatpush1.bf16.msra.mxu0 0
    %807 = vmatprep.subr.bf16.mxu0 0
    %808 = vmatpush1.bf16.msra.mxu0 0
    %809 = vmatprep.subr.bf16.mxu0 0
    %810 = vmatpush1.bf16.msra.mxu0 0
    %811 = vmatprep.subr.bf16.mxu0 0
    %812 = vmatpush1.bf16.msra.mxu0 0
    %813 = vmatprep.subr.bf16.mxu0 0
    %814 = vmatpush1.bf16.msra.mxu0 0
    %815 = vmatprep.subr.bf16.mxu0 0
    %816 = vmatpush1.bf16.msra.mxu0 0
    %817 = vmatprep.subr.bf16.mxu0 0
    %818 = vmatpush1.bf16.msra.mxu0 0
    %819 = vmatprep.subr.bf16.mxu0 0
    %820 = vmatpush1.bf16.msra.mxu0 0
    %821 = vmatprep.subr.bf16.mxu0 0
    %822 = vmatpush1.bf16.msra.mxu0 0
    %823 = vmatprep.subr.bf16.mxu0 0
    %824 = vmatpush1.bf16.msra.mxu0 0
    %825 = vmatprep.subr.bf16.mxu0 0
    %826 = vmatpush1.bf16.msra.mxu0 0
    %827 = vmatprep.subr.bf16.mxu0 0
    %828 = vmatpush1.bf16.msra.mxu0 0
    %829 = vmatprep.subr.bf16.mxu0 0
    %830 = vmatpush1.bf16.msra.mxu0 0
    %831 = vmatprep.mubr.bf16.mxu0 0
    %832 = vmatmul.mubr.bf16.gmra.mrb[0].mxu0 %v794
    %v833 = vpop.f32.mrb[0].mxu0
    %v834 = vadd.f32 0.0, %v833
    %v835 = vpop.f32.mrb[0].mxu0
    %v836 = vpop.f32.mrb[0].mxu0
    %v837 = vpop.f32.mrb[0].mxu0
    %838 = vdwg.mxu0
    %840 = vrot.lane.b32.xlu0 %v834, 32
    %v841 = vpop.permute.xlu0 %840
    %vm843 = vcmask 392448
    %844 = vst.msk [vmem:[#allocation2] sm:$0xff] %vm843, %v841
    %s845 = scalar_lea.vmem %s1, 56
    %v846 = vld [vmem:[%s845] sm:$0xff]
    %v847 = vld [vmem:[%s356] sm:$0xff]
    %v848 = vmax.f32 %v846, 1e-06
    %v849 = vlog2.pop %v848
    %v850 = vmul.f32 %v849, 0.6931472
    %851 = vrot.lane.b32.xlu0 %v362, 96
    %v852 = vpop.permute.xlu0 %851
    %853 = vrot.lane.b32.xlu0 %v364, 96
    %v854 = vpop.permute.xlu0 %853
    %v856 = vsel %vm244, %v852, 0
    %v859 = vsel %vm244, %v854, 0
    %861 = vmatprep.subr.bf16.mxu0 0
    %862 = vmatpush1.bf16.xpose.msra.mxu0 %v859
    %863 = vmatprep.subr.bf16.mxu0 0
    %864 = vmatpush1.bf16.xpose.msra.mxu0 0
    %865 = vmatprep.subr.bf16.mxu0 0
    %866 = vmatpush1.bf16.xpose.msra.mxu0 0
    %867 = vmatprep.subr.bf16.mxu0 0
    %868 = vmatpush1.bf16.xpose.msra.mxu0 0
    %869 = vmatprep.subr.bf16.mxu0 0
    %870 = vmatpush1.bf16.xpose.msra.mxu0 0
    %871 = vmatprep.subr.bf16.mxu0 0
    %872 = vmatpush1.bf16.xpose.msra.mxu0 0
    %873 = vmatprep.subr.bf16.mxu0 0
    %874 = vmatpush1.bf16.xpose.msra.mxu0 0
    %875 = vmatprep.subr.bf16.mxu0 0
    %876 = vmatpush1.bf16.xpose.msra.mxu0 0
    %877 = vmatprep.subr.bf16.mxu0 0
    %878 = vmatpush1.bf16.xpose.msra.mxu0 0
    %879 = vmatprep.subr.bf16.mxu0 0
    %880 = vmatpush1.bf16.xpose.msra.mxu0 0
    %881 = vmatprep.subr.bf16.mxu0 0
    %882 = vmatpush1.bf16.xpose.msra.mxu0 0
    %883 = vmatprep.subr.bf16.mxu0 0
    %884 = vmatpush1.bf16.xpose.msra.mxu0 0
    %885 = vmatprep.subr.bf16.mxu0 0
    %886 = vmatpush1.bf16.xpose.msra.mxu0 0
    %887 = vmatprep.subr.bf16.mxu0 0
    %888 = vmatpush1.bf16.xpose.msra.mxu0 0
    %889 = vmatprep.subr.bf16.mxu0 0
    %890 = vmatpush1.bf16.xpose.msra.mxu0 0
    %891 = vmatprep.subr.bf16.mxu0 0
    %892 = vmatpush1.bf16.xpose.msra.mxu0 0
    %893 = vmatprep.mubr.bf16.mxu0 0
    %894 = vmatmul.mubr.bf16.gmra.mrb[0].mxu0 %v856
    %v895 = vpop.f32.mrb[0].mxu0
    %v896 = vadd.f32 %v850, %v895
    %v897 = vpop.f32.mrb[0].mxu0
    %v898 = vpop.f32.mrb[0].mxu0
    %v899 = vpop.f32.mrb[0].mxu0
    %900 = vdwg.mxu0
    %vm901 = vcmp.gt.f32.partialorder %v847, 0.0
    %v902 = vsel %vm901, -1e+09, %v896
    %v903 = vsel %vm293, %v902, -inf
    %904 = vmax.xlane.f32.xlu0 %v903
    %v905 = vpop.xlane.xlu0 %904
    %v906 = vsub.f32 %v902, %v905
    %v907 = vmul.f32 %v906, 1.442695
    %v908 = vpow.pop %v907
    %v909 = vsel %vm293, %v908, 0.0
    %910 = vadd.xlane.f32.xlu0 %v909
    %v911 = vpop.xlane.xlu0 %910
    %v912 = vrcp.pop %v911
    %v913 = vmul.f32 %v908, %v912
    %v914 = vpack.c.bf16 %v913, %v913
    %915 = vrot.lane.b32.xlu0 %v426, 96
    %v916 = vpop.permute.xlu0 %915
    %v918 = vsel %vm293, %v914, 0
    %v921 = vsel %vm309, %v916, 0
    %923 = vmatprep.subr.bf16.mxu0 0
    %924 = vmatpush1.bf16.msra.mxu0 %v921
    %925 = vmatprep.subr.bf16.mxu0 0
    %926 = vmatpush1.bf16.msra.mxu0 0
    %927 = vmatprep.subr.bf16.mxu0 0
    %928 = vmatpush1.bf16.msra.mxu0 0
    %929 = vmatprep.subr.bf16.mxu0 0
    %930 = vmatpush1.bf16.msra.mxu0 0
    %931 = vmatprep.subr.bf16.mxu0 0
    %932 = vmatpush1.bf16.msra.mxu0 0
    %933 = vmatprep.subr.bf16.mxu0 0
    %934 = vmatpush1.bf16.msra.mxu0 0
    %935 = vmatprep.subr.bf16.mxu0 0
    %936 = vmatpush1.bf16.msra.mxu0 0
    %937 = vmatprep.subr.bf16.mxu0 0
    %938 = vmatpush1.bf16.msra.mxu0 0
    %939 = vmatprep.subr.bf16.mxu0 0
    %940 = vmatpush1.bf16.msra.mxu0 0
    %941 = vmatprep.subr.bf16.mxu0 0
    %942 = vmatpush1.bf16.msra.mxu0 0
    %943 = vmatprep.subr.bf16.mxu0 0
    %944 = vmatpush1.bf16.msra.mxu0 0
    %945 = vmatprep.subr.bf16.mxu0 0
    %946 = vmatpush1.bf16.msra.mxu0 0
    %947 = vmatprep.subr.bf16.mxu0 0
    %948 = vmatpush1.bf16.msra.mxu0 0
    %949 = vmatprep.subr.bf16.mxu0 0
    %950 = vmatpush1.bf16.msra.mxu0 0
    %951 = vmatprep.subr.bf16.mxu0 0
    %952 = vmatpush1.bf16.msra.mxu0 0
    %953 = vmatprep.subr.bf16.mxu0 0
    %954 = vmatpush1.bf16.msra.mxu0 0
    %955 = vmatprep.mubr.bf16.mxu0 0
    %956 = vmatmul.mubr.bf16.gmra.mrb[0].mxu0 %v918
    %v957 = vpop.f32.mrb[0].mxu0
    %v958 = vadd.f32 0.0, %v957
    %v959 = vpop.f32.mrb[0].mxu0
    %v960 = vpop.f32.mrb[0].mxu0
    %v961 = vpop.f32.mrb[0].mxu0
    %962 = vdwg.mxu0
    %964 = vrot.lane.b32.xlu0 %v958, 32
    %v965 = vpop.permute.xlu0 %964
    %967 = vst.msk [vmem:[#allocation2 + $0x8] sm:$0xff] %vm843, %v965
    %s968 = scalar_lea.vmem %s1, 24
    %v969 = vld [vmem:[%s968] sm:$0xff]
    %v970 = vld [vmem:[%s239] sm:$0xff]
    %v971 = vmax.f32 %v969, 1e-06
    %v972 = vlog2.pop %v971
    %v973 = vmul.f32 %v972, 0.6931472
    %974 = vrot.lane.b32.xlu0 %v235, 80
    %v975 = vpop.permute.xlu0 %974
    %976 = vrot.lane.b32.xlu0 %v236, 80
    %v977 = vpop.permute.xlu0 %976
    %v979 = vsel %vm244, %v975, 0
    %v982 = vsel %vm244, %v977, 0
    %984 = vmatprep.subr.bf16.mxu0 0
    %985 = vmatpush1.bf16.xpose.msra.mxu0 %v982
    %986 = vmatprep.subr.bf16.mxu0 0
    %987 = vmatpush1.bf16.xpose.msra.mxu0 0
    %988 = vmatprep.subr.bf16.mxu0 0
    %989 = vmatpush1.bf16.xpose.msra.mxu0 0
    %990 = vmatprep.subr.bf16.mxu0 0
    %991 = vmatpush1.bf16.xpose.msra.mxu0 0
    %992 = vmatprep.subr.bf16.mxu0 0
    %993 = vmatpush1.bf16.xpose.msra.mxu0 0
    %994 = vmatprep.subr.bf16.mxu0 0
    %995 = vmatpush1.bf16.xpose.msra.mxu0 0
    %996 = vmatprep.subr.bf16.mxu0 0
    %997 = vmatpush1.bf16.xpose.msra.mxu0 0
    %998 = vmatprep.subr.bf16.mxu0 0
    %999 = vmatpush1.bf16.xpose.msra.mxu0 0
    %1000 = vmatprep.subr.bf16.mxu0 0
    %1001 = vmatpush1.bf16.xpose.msra.mxu0 0
    %1002 = vmatprep.subr.bf16.mxu0 0
    %1003 = vmatpush1.bf16.xpose.msra.mxu0 0
    %1004 = vmatprep.subr.bf16.mxu0 0
    %1005 = vmatpush1.bf16.xpose.msra.mxu0 0
    %1006 = vmatprep.subr.bf16.mxu0 0
    %1007 = vmatpush1.bf16.xpose.msra.mxu0 0
    %1008 = vmatprep.subr.bf16.mxu0 0
    %1009 = vmatpush1.bf16.xpose.msra.mxu0 0
    %1010 = vmatprep.subr.bf16.mxu0 0
    %1011 = vmatpush1.bf16.xpose.msra.mxu0 0
    %1012 = vmatprep.subr.bf16.mxu0 0
    %1013 = vmatpush1.bf16.xpose.msra.mxu0 0
    %1014 = vmatprep.subr.bf16.mxu0 0
    %1015 = vmatpush1.bf16.xpose.msra.mxu0 0
    %1016 = vmatprep.mubr.bf16.mxu0 0
    %1017 = vmatmul.mubr.bf16.gmra.mrb[0].mxu0 %v979
    %v1018 = vpop.f32.mrb[0].mxu0
    %v1019 = vadd.f32 %v973, %v1018
    %v1020 = vpop.f32.mrb[0].mxu0
    %v1021 = vpop.f32.mrb[0].mxu0
    %v1022 = vpop.f32.mrb[0].mxu0
    %1023 = vdwg.mxu0
    %vm1024 = vcmp.gt.f32.partialorder %v970, 0.0
    %v1025 = vsel %vm1024, -1e+09, %v1019
    %v1026 = vsel %vm293, %v1025, -inf
    %1027 = vmax.xlane.f32.xlu0 %v1026
    %v1028 = vpop.xlane.xlu0 %1027
    %v1029 = vsub.f32 %v1025, %v1028
    %v1030 = vmul.f32 %v1029, 1.442695
    %v1031 = vpow.pop %v1030
    %v1032 = vsel %vm293, %v1031, 0.0
    %1033 = vadd.xlane.f32.xlu0 %v1032
    %v1034 = vpop.xlane.xlu0 %1033
    %v1035 = vrcp.pop %v1034
    %v1036 = vmul.f32 %v1031, %v1035
    %v1037 = vpack.c.bf16 %v1036, %v1036
    %1038 = vrot.lane.b32.xlu0 %v237, 80
    %v1039 = vpop.permute.xlu0 %1038
    %v1041 = vsel %vm293, %v1037, 0
    %v1044 = vsel %vm309, %v1039, 0
    %1046 = vmatprep.subr.bf16.mxu0 0
    %1047 = vmatpush1.bf16.msra.mxu0 %v1044
    %1048 = vmatprep.subr.bf16.mxu0 0
    %1049 = vmatpush1.bf16.msra.mxu0 0
    %1050 = vmatprep.subr.bf16.mxu0 0
    %1051 = vmatpush1.bf16.msra.mxu0 0
    %1052 = vmatprep.subr.bf16.mxu0 0
    %1053 = vmatpush1.bf16.msra.mxu0 0
    %1054 = vmatprep.subr.bf16.mxu0 0
    %1055 = vmatpush1.bf16.msra.mxu0 0
    %1056 = vmatprep.subr.bf16.mxu0 0
    %1057 = vmatpush1.bf16.msra.mxu0 0
    %1058 = vmatprep.subr.bf16.mxu0 0
    %1059 = vmatpush1.bf16.msra.mxu0 0
    %1060 = vmatprep.subr.bf16.mxu0 0
    %1061 = vmatpush1.bf16.msra.mxu0 0
    %1062 = vmatprep.subr.bf16.mxu0 0
    %1063 = vmatpush1.bf16.msra.mxu0 0
    %1064 = vmatprep.subr.bf16.mxu0 0
    %1065 = vmatpush1.bf16.msra.mxu0 0
    %1066 = vmatprep.subr.bf16.mxu0 0
    %1067 = vmatpush1.bf16.msra.mxu0 0
    %1068 = vmatprep.subr.bf16.mxu0 0
    %1069 = vmatpush1.bf16.msra.mxu0 0
    %1070 = vmatprep.subr.bf16.mxu0 0
    %1071 = vmatpush1.bf16.msra.mxu0 0
    %1072 = vmatprep.subr.bf16.mxu0 0
    %1073 = vmatpush1.bf16.msra.mxu0 0
    %1074 = vmatprep.subr.bf16.mxu0 0
    %1075 = vmatpush1.bf16.msra.mxu0 0
    %1076 = vmatprep.subr.bf16.mxu0 0
    %1077 = vmatpush1.bf16.msra.mxu0 0
    %1078 = vmatprep.mubr.bf16.mxu0 0
    %1079 = vmatmul.mubr.bf16.gmra.mrb[0].mxu0 %v1041
    %v1080 = vpop.f32.mrb[0].mxu0
    %v1081 = vadd.f32 0.0, %v1080
    %v1082 = vpop.f32.mrb[0].mxu0
    %v1083 = vpop.f32.mrb[0].mxu0
    %v1084 = vpop.f32.mrb[0].mxu0
    %1085 = vdwg.mxu0
    %1087 = vrot.lane.b32.xlu0 %v1081, 48
    %v1088 = vpop.permute.xlu0 %1087
    %vm1090 = vcmask 523648
    %1091 = vst.msk [vmem:[#allocation2] sm:$0xff] %vm1090, %v1088
    %s1092 = scalar_lea.vmem %s1, 64
    %v1093 = vld [vmem:[%s1092] sm:$0xff]
    %v1094 = vld [vmem:[%s356] sm:$0xff]
    %v1095 = vmax.f32 %v1093, 1e-06
    %v1096 = vlog2.pop %v1095
    %v1097 = vmul.f32 %v1096, 0.6931472
    %1098 = vrot.lane.b32.xlu0 %v362, 80
    %v1099 = vpop.permute.xlu0 %1098
    %1100 = vrot.lane.b32.xlu0 %v364, 80
    %v1101 = vpop.permute.xlu0 %1100
    %v1103 = vsel %vm244, %v1099, 0
    %v1106 = vsel %vm244, %v1101, 0
    %1108 = vmatprep.subr.bf16.mxu0 0
    %1109 = vmatpush1.bf16.xpose.msra.mxu0 %v1106
    %1110 = vmatprep.subr.bf16.mxu0 0
    %1111 = vmatpush1.bf16.xpose.msra.mxu0 0
    %1112 = vmatprep.subr.bf16.mxu0 0
    %1113 = vmatpush1.bf16.xpose.msra.mxu0 0
    %1114 = vmatprep.subr.bf16.mxu0 0
    %1115 = vmatpush1.bf16.xpose.msra.mxu0 0
    %1116 = vmatprep.subr.bf16.mxu0 0
    %1117 = vmatpush1.bf16.xpose.msra.mxu0 0
    %1118 = vmatprep.subr.bf16.mxu0 0
    %1119 = vmatpush1.bf16.xpose.msra.mxu0 0
    %1120 = vmatprep.subr.bf16.mxu0 0
    %1121 = vmatpush1.bf16.xpose.msra.mxu0 0
    %1122 = vmatprep.subr.bf16.mxu0 0
    %1123 = vmatpush1.bf16.xpose.msra.mxu0 0
    %1124 = vmatprep.subr.bf16.mxu0 0
    %1125 = vmatpush1.bf16.xpose.msra.mxu0 0
    %1126 = vmatprep.subr.bf16.mxu0 0
    %1127 = vmatpush1.bf16.xpose.msra.mxu0 0
    %1128 = vmatprep.subr.bf16.mxu0 0
    %1129 = vmatpush1.bf16.xpose.msra.mxu0 0
    %1130 = vmatprep.subr.bf16.mxu0 0
    %1131 = vmatpush1.bf16.xpose.msra.mxu0 0
    %1132 = vmatprep.subr.bf16.mxu0 0
    %1133 = vmatpush1.bf16.xpose.msra.mxu0 0
    %1134 = vmatprep.subr.bf16.mxu0 0
    %1135 = vmatpush1.bf16.xpose.msra.mxu0 0
    %1136 = vmatprep.subr.bf16.mxu0 0
    %1137 = vmatpush1.bf16.xpose.msra.mxu0 0
    %1138 = vmatprep.subr.bf16.mxu0 0
    %1139 = vmatpush1.bf16.xpose.msra.mxu0 0
    %1140 = vmatprep.mubr.bf16.mxu0 0
    %1141 = vmatmul.mubr.bf16.gmra.mrb[0].mxu0 %v1103
    %v1142 = vpop.f32.mrb[0].mxu0
    %v1143 = vadd.f32 %v1097, %v1142
    %v1144 = vpop.f32.mrb[0].mxu0
    %v1145 = vpop.f32.mrb[0].mxu0
    %v1146 = vpop.f32.mrb[0].mxu0
    %1147 = vdwg.mxu0
    %vm1148 = vcmp.gt.f32.partialorder %v1094, 0.0
    %v1149 = vsel %vm1148, -1e+09, %v1143
    %v1150 = vsel %vm293, %v1149, -inf
    %1151 = vmax.xlane.f32.xlu0 %v1150
    %v1152 = vpop.xlane.xlu0 %1151
    %v1153 = vsub.f32 %v1149, %v1152
    %v1154 = vmul.f32 %v1153, 1.442695
    %v1155 = vpow.pop %v1154
    %v1156 = vsel %vm293, %v1155, 0.0
    %1157 = vadd.xlane.f32.xlu0 %v1156
    %v1158 = vpop.xlane.xlu0 %1157
    %v1159 = vrcp.pop %v1158
    %v1160 = vmul.f32 %v1155, %v1159
    %v1161 = vpack.c.bf16 %v1160, %v1160
    %1162 = vrot.lane.b32.xlu0 %v426, 80
    %v1163 = vpop.permute.xlu0 %1162
    %v1165 = vsel %vm293, %v1161, 0
    %v1168 = vsel %vm309, %v1163, 0
    %1170 = vmatprep.subr.bf16.mxu0 0
    %1171 = vmatpush1.bf16.msra.mxu0 %v1168
    %1172 = vmatprep.subr.bf16.mxu0 0
    %1173 = vmatpush1.bf16.msra.mxu0 0
    %1174 = vmatprep.subr.bf16.mxu0 0
    %1175 = vmatpush1.bf16.msra.mxu0 0
    %1176 = vmatprep.subr.bf16.mxu0 0
    %1177 = vmatpush1.bf16.msra.mxu0 0
    %1178 = vmatprep.subr.bf16.mxu0 0
    %1179 = vmatpush1.bf16.msra.mxu0 0
    %1180 = vmatprep.subr.bf16.mxu0 0
    %1181 = vmatpush1.bf16.msra.mxu0 0
    %1182 = vmatprep.subr.bf16.mxu0 0
    %1183 = vmatpush1.bf16.msra.mxu0 0
    %1184 = vmatprep.subr.bf16.mxu0 0
    %1185 = vmatpush1.bf16.msra.mxu0 0
    %1186 = vmatprep.subr.bf16.mxu0 0
    %1187 = vmatpush1.bf16.msra.mxu0 0
    %1188 = vmatprep.subr.bf16.mxu0 0
    %1189 = vmatpush1.bf16.msra.mxu0 0
    %1190 = vmatprep.subr.bf16.mxu0 0
    %1191 = vmatpush1.bf16.msra.mxu0 0
    %1192 = vmatprep.subr.bf16.mxu0 0
    %1193 = vmatpush1.bf16.msra.mxu0 0
    %1194 = vmatprep.subr.bf16.mxu0 0
    %1195 = vmatpush1.bf16.msra.mxu0 0
    %1196 = vmatprep.subr.bf16.mxu0 0
    %1197 = vmatpush1.bf16.msra.mxu0 0
    %1198 = vmatprep.subr.bf16.mxu0 0
    %1199 = vmatpush1.bf16.msra.mxu0 0
    %1200 = vmatprep.subr.bf16.mxu0 0
    %1201 = vmatpush1.bf16.msra.mxu0 0
    %1202 = vmatprep.mubr.bf16.mxu0 0
    %1203 = vmatmul.mubr.bf16.gmra.mrb[0].mxu0 %v1165
    %v1204 = vpop.f32.mrb[0].mxu0
    %v1205 = vadd.f32 0.0, %v1204
    %v1206 = vpop.f32.mrb[0].mxu0
    %v1207 = vpop.f32.mrb[0].mxu0
    %v1208 = vpop.f32.mrb[0].mxu0
    %1209 = vdwg.mxu0
    %1211 = vrot.lane.b32.xlu0 %v1205, 48
    %v1212 = vpop.permute.xlu0 %1211
    %1214 = vst.msk [vmem:[#allocation2 + $0x8] sm:$0xff] %vm1090, %v1212
    %v1215 = vld [vmem:[#allocation2] sm:$0xff]
    %v1216 = vld [vmem:[#allocation2 + $0x8] sm:$0xff]
    %v1217 = vpack.c.bf16 %v1216, %v1215
    %v1218 = vld [vmem:[%s2 + $0x30] sm:$0xf]
    %v1219 = vld [vmem:[%s2 + $0x34] sm:$0xf]
    %v1220 = vld [vmem:[%s2 + $0x38] sm:$0xf]
    %v1221 = vld [vmem:[%s2 + $0x3c] sm:$0xf]
    %v1222 = vld [vmem:[%s2 + $0x40] sm:$0xf]
    %v1223 = vld [vmem:[%s2 + $0x44] sm:$0xf]
    %v1224 = vld [vmem:[%s2 + $0x48] sm:$0xf]
    %v1225 = vld [vmem:[%s2 + $0x4c] sm:$0xf]
    %v1226 = vld [vmem:[%s3 + $0x3] sm:$0x1]
    %v1227 = vlaneseq
    %v1228 = vshrl.u32 %v1227, 7
    %v1229 = vsub.s32 0, %v1228
    %v1230 = vrot.slane %v1226, %v1229
    %v1239 = vunpack.c.l.b16 %v1218
    %v1240 = vunpack.c.l.b16 %v1219
    %v1241 = vunpack.c.l.b16 %v1220
    %v1242 = vunpack.c.l.b16 %v1221
    %v1243 = vunpack.c.l.b16 %v1222
    %v1244 = vunpack.c.l.b16 %v1223
    %v1245 = vunpack.c.l.b16 %v1224
    %v1246 = vunpack.c.l.b16 %v1225
    %v1247 = vpack.c.b16 %v1240, %v1239
    %v1248 = vpack.c.b16 %v1242, %v1241
    %v1249 = vpack.c.b16 %v1244, %v1243
    %v1250 = vpack.c.b16 %v1246, %v1245
    %vm1255 = vcmask 523264
    %v1257 = vsel %vm1255, %v1217, 0
    %1259 = vmatprep.subr.bf16.mxu0 0
    %1260 = vmatpush1.bf16.msra.mxu0 %v1247
    %1261 = vmatprep.subr.bf16.mxu0 0
    %1262 = vmatpush1.bf16.msra.mxu0 %v1248
    %1263 = vmatprep.subr.bf16.mxu0 0
    %1264 = vmatpush1.bf16.msra.mxu0 %v1249
    %1265 = vmatprep.subr.bf16.mxu0 0
    %1266 = vmatpush1.bf16.msra.mxu0 %v1250
    %1267 = vmatprep.subr.bf16.mxu0 0
    %1268 = vmatpush1.bf16.msra.mxu0 0
    %1269 = vmatprep.subr.bf16.mxu0 0
    %1270 = vmatpush1.bf16.msra.mxu0 0
    %1271 = vmatprep.subr.bf16.mxu0 0
    %1272 = vmatpush1.bf16.msra.mxu0 0
    %1273 = vmatprep.subr.bf16.mxu0 0
    %1274 = vmatpush1.bf16.msra.mxu0 0
    %1275 = vmatprep.subr.bf16.mxu0 0
    %1276 = vmatpush1.bf16.msra.mxu0 0
    %1277 = vmatprep.subr.bf16.mxu0 0
    %1278 = vmatpush1.bf16.msra.mxu0 0
    %1279 = vmatprep.subr.bf16.mxu0 0
    %1280 = vmatpush1.bf16.msra.mxu0 0
    %1281 = vmatprep.subr.bf16.mxu0 0
    %1282 = vmatpush1.bf16.msra.mxu0 0
    %1283 = vmatprep.subr.bf16.mxu0 0
    %1284 = vmatpush1.bf16.msra.mxu0 0
    %1285 = vmatprep.subr.bf16.mxu0 0
    %1286 = vmatpush1.bf16.msra.mxu0 0
    %1287 = vmatprep.subr.bf16.mxu0 0
    %1288 = vmatpush1.bf16.msra.mxu0 0
    %1289 = vmatprep.subr.bf16.mxu0 0
    %1290 = vmatpush1.bf16.msra.mxu0 0
    %1291 = vmatprep.mubr.bf16.mxu0 0
    %1292 = vmatmul.mubr.bf16.gmra.mrb[0].mxu0 %v1257
    %v1293 = vpop.f32.mrb[0].mxu0
    %v1294 = vadd.f32 %v1230, %v1293
    %v1295 = vpop.f32.mrb[0].mxu0
    %v1296 = vpop.f32.mrb[0].mxu0
    %v1297 = vadd.f32 %v1230, %v1296
    %v1298 = vpop.f32.mrb[0].mxu0
    %1299 = vdwg.mxu0
    %v1300 = vadd.f32 %v19, %v1294
    %v1301 = vadd.f32 %v20, %v1297
    %v1302 = vsel %vm60, %v1300, 0.0
    %1303 = vadd.xlane.f32.xlu0 %v1302
    %v1304 = vpop.xlane.xlu0 %1303
    %v1305 = vsel %vm60, %v1301, 0.0
    %1306 = vadd.xlane.f32.xlu0 %v1305
    %v1307 = vpop.xlane.xlu0 %1306
    %v1308 = vrcp.pop 32.0
    %v1309 = vmul.f32 %v1304, %v1308
    %v1310 = vmul.f32 %v1307, %v1308
    %v1311 = vsub.f32 %v1300, %v1309
    %v1312 = vsub.f32 %v1301, %v1310
    %v1313 = vmul.f32 %v1311, %v1311
    %v1314 = vmul.f32 %v1312, %v1312
    %v1315 = vsel %vm60, %v1313, 0.0
    %1316 = vadd.xlane.f32.xlu0 %v1315
    %v1317 = vpop.xlane.xlu0 %1316
    %v1318 = vsel %vm60, %v1314, 0.0
    %1319 = vadd.xlane.f32.xlu0 %v1318
    %v1320 = vpop.xlane.xlu0 %1319
    %v1321 = vmul.f32 %v1317, %v1308
    %v1322 = vmul.f32 %v1320, %v1308
    %v1323 = vadd.f32 %v1321, 1e-05
    %v1324 = vadd.f32 %v1322, 1e-05
    %v1325 = vrsqrt.pop %v1323
    %v1326 = vrsqrt.pop %v1324
    %v1327 = vmul.f32 %v1311, %v1325
    %v1328 = vmul.f32 %v1312, %v1326
    %v1329 = vld [vmem:[%s3 + $0x4] sm:$0x1]
    %v1330 = vlaneseq
    %v1331 = vshrl.u32 %v1330, 7
    %v1332 = vsub.s32 0, %v1331
    %v1333 = vrot.slane %v1329, %v1332
    %v1334 = vmul.f32 %v1327, %v1333
    %v1335 = vmul.f32 %v1328, %v1333
    %v1336 = vld [vmem:[%s3 + $0x5] sm:$0x1]
    %v1337 = vlaneseq
    %v1338 = vshrl.u32 %v1337, 7
    %v1339 = vsub.s32 0, %v1338
    %v1340 = vrot.slane %v1336, %v1339
    %v1341 = vadd.f32 %v1334, %v1340
    %v1342 = vadd.f32 %v1335, %v1340
    %v1343 = vpack.c.bf16 %v1342, %v1341
    %v1344 = vld [vmem:[%s2 + $0x50] sm:$0xf]
    %v1345 = vld [vmem:[%s2 + $0x54] sm:$0xf]
    %v1346 = vld [vmem:[%s2 + $0x58] sm:$0xf]
    %v1347 = vld [vmem:[%s2 + $0x5c] sm:$0xf]
    %v1348 = vld [vmem:[%s3 + $0x6] sm:$0x1]
    %v1349 = vlaneseq
    %v1350 = vshrl.u32 %v1349, 7
    %v1351 = vsub.s32 0, %v1350
    %v1352 = vrot.slane %v1348, %v1351
    %v1357 = vunpack.c.l.b16 %v1344
    %v1358 = vunpack.c.l.b16 %v1345
    %v1359 = vunpack.c.l.b16 %v1346
    %v1360 = vunpack.c.l.b16 %v1347
    %v1361 = vpack.c.b16 %v1358, %v1357
    %v1362 = vpack.c.b16 %v1360, %v1359
    %v1366 = vsel %vm60, %v1343, 0
    %1368 = vmatprep.subr.bf16.mxu0 0
    %1369 = vmatpush1.bf16.msra.mxu0 %v1361
    %1370 = vmatprep.subr.bf16.mxu0 0
    %1371 = vmatpush1.bf16.msra.mxu0 %v1362
    %1372 = vmatprep.subr.bf16.mxu0 0
    %1373 = vmatpush1.bf16.msra.mxu0 0
    %1374 = vmatprep.subr.bf16.mxu0 0
    %1375 = vmatpush1.bf16.msra.mxu0 0
    %1376 = vmatprep.subr.bf16.mxu0 0
    %1377 = vmatpush1.bf16.msra.mxu0 0
    %1378 = vmatprep.subr.bf16.mxu0 0
    %1379 = vmatpush1.bf16.msra.mxu0 0
    %1380 = vmatprep.subr.bf16.mxu0 0
    %1381 = vmatpush1.bf16.msra.mxu0 0
    %1382 = vmatprep.subr.bf16.mxu0 0
    %1383 = vmatpush1.bf16.msra.mxu0 0
    %1384 = vmatprep.subr.bf16.mxu0 0
    %1385 = vmatpush1.bf16.msra.mxu0 0
    %1386 = vmatprep.subr.bf16.mxu0 0
    %1387 = vmatpush1.bf16.msra.mxu0 0
    %1388 = vmatprep.subr.bf16.mxu0 0
    %1389 = vmatpush1.bf16.msra.mxu0 0
    %1390 = vmatprep.subr.bf16.mxu0 0
    %1391 = vmatpush1.bf16.msra.mxu0 0
    %1392 = vmatprep.subr.bf16.mxu0 0
    %1393 = vmatpush1.bf16.msra.mxu0 0
    %1394 = vmatprep.subr.bf16.mxu0 0
    %1395 = vmatpush1.bf16.msra.mxu0 0
    %1396 = vmatprep.subr.bf16.mxu0 0
    %1397 = vmatpush1.bf16.msra.mxu0 0
    %1398 = vmatprep.subr.bf16.mxu0 0
    %1399 = vmatpush1.bf16.msra.mxu0 0
    %1400 = vmatprep.mubr.bf16.mxu0 0
    %1401 = vmatmul.mubr.bf16.gmra.mrb[0].mxu0 %v1366
    %v1402 = vpop.f32.mrb[0].mxu0
    %v1403 = vadd.f32 %v1352, %v1402
    %v1404 = vpop.f32.mrb[0].mxu0
    %v1405 = vpop.f32.mrb[0].mxu0
    %v1406 = vadd.f32 %v1352, %v1405
    %v1407 = vpop.f32.mrb[0].mxu0
    %1408 = vdwg.mxu0
    %v1409 = vmax.f32 %v1403, 0.0
    %v1410 = vmax.f32 %v1406, 0.0
    %v1411 = vpack.c.bf16 %v1410, %v1409
    %v1412 = vld [vmem:[%s2 + $0x60] sm:$0xf]
    %v1413 = vld [vmem:[%s2 + $0x64] sm:$0xf]
    %v1414 = vld [vmem:[%s2 + $0x68] sm:$0xf]
    %v1415 = vld [vmem:[%s2 + $0x6c] sm:$0xf]
    %v1416 = vld [vmem:[%s2 + $0x70] sm:$0xf]
    %v1417 = vld [vmem:[%s2 + $0x74] sm:$0xf]
    %v1418 = vld [vmem:[%s2 + $0x78] sm:$0xf]
    %v1419 = vld [vmem:[%s2 + $0x7c] sm:$0xf]
    %v1420 = vld [vmem:[%s3 + $0x7] sm:$0x1]
    %v1421 = vlaneseq
    %v1422 = vshrl.u32 %v1421, 7
    %v1423 = vsub.s32 0, %v1422
    %v1424 = vrot.slane %v1420, %v1423
    %v1433 = vunpack.c.l.b16 %v1412
    %v1434 = vunpack.c.l.b16 %v1413
    %v1435 = vunpack.c.l.b16 %v1414
    %v1436 = vunpack.c.l.b16 %v1415
    %v1437 = vunpack.c.l.b16 %v1416
    %v1438 = vunpack.c.l.b16 %v1417
    %v1439 = vunpack.c.l.b16 %v1418
    %v1440 = vunpack.c.l.b16 %v1419
    %v1441 = vpack.c.b16 %v1434, %v1433
    %v1442 = vpack.c.b16 %v1436, %v1435
    %v1443 = vpack.c.b16 %v1438, %v1437
    %v1444 = vpack.c.b16 %v1440, %v1439
    %v1450 = vsel %vm1255, %v1411, 0
    %1452 = vmatprep.subr.bf16.mxu0 0
    %1453 = vmatpush1.bf16.msra.mxu0 %v1441
    %1454 = vmatprep.subr.bf16.mxu0 0
    %1455 = vmatpush1.bf16.msra.mxu0 %v1442
    %1456 = vmatprep.subr.bf16.mxu0 0
    %1457 = vmatpush1.bf16.msra.mxu0 %v1443
    %1458 = vmatprep.subr.bf16.mxu0 0
    %1459 = vmatpush1.bf16.msra.mxu0 %v1444
    %1460 = vmatprep.subr.bf16.mxu0 0
    %1461 = vmatpush1.bf16.msra.mxu0 0
    %1462 = vmatprep.subr.bf16.mxu0 0
    %1463 = vmatpush1.bf16.msra.mxu0 0
    %1464 = vmatprep.subr.bf16.mxu0 0
    %1465 = vmatpush1.bf16.msra.mxu0 0
    %1466 = vmatprep.subr.bf16.mxu0 0
    %1467 = vmatpush1.bf16.msra.mxu0 0
    %1468 = vmatprep.subr.bf16.mxu0 0
    %1469 = vmatpush1.bf16.msra.mxu0 0
    %1470 = vmatprep.subr.bf16.mxu0 0
    %1471 = vmatpush1.bf16.msra.mxu0 0
    %1472 = vmatprep.subr.bf16.mxu0 0
    %1473 = vmatpush1.bf16.msra.mxu0 0
    %1474 = vmatprep.subr.bf16.mxu0 0
    %1475 = vmatpush1.bf16.msra.mxu0 0
    %1476 = vmatprep.subr.bf16.mxu0 0
    %1477 = vmatpush1.bf16.msra.mxu0 0
    %1478 = vmatprep.subr.bf16.mxu0 0
    %1479 = vmatpush1.bf16.msra.mxu0 0
    %1480 = vmatprep.subr.bf16.mxu0 0
    %1481 = vmatpush1.bf16.msra.mxu0 0
    %1482 = vmatprep.subr.bf16.mxu0 0
    %1483 = vmatpush1.bf16.msra.mxu0 0
    %1484 = vmatprep.mubr.bf16.mxu0 0
    %1485 = vmatmul.mubr.bf16.gmra.mrb[0].mxu0 %v1450
    %v1486 = vpop.f32.mrb[0].mxu0
    %v1487 = vadd.f32 %v1424, %v1486
    %v1488 = vpop.f32.mrb[0].mxu0
    %v1489 = vpop.f32.mrb[0].mxu0
    %v1490 = vadd.f32 %v1424, %v1489
    %v1491 = vpop.f32.mrb[0].mxu0
    %1492 = vdwg.mxu0
    %v1493 = vadd.f32 %v1341, %v1487
    %v1494 = vadd.f32 %v1342, %v1490
    %v1495 = vsel %vm60, %v1493, 0.0
    %1496 = vadd.xlane.f32.xlu0 %v1495
    %v1497 = vpop.xlane.xlu0 %1496
    %v1498 = vsel %vm60, %v1494, 0.0
    %1499 = vadd.xlane.f32.xlu0 %v1498
    %v1500 = vpop.xlane.xlu0 %1499
    %v1501 = vmul.f32 %v1497, %v1308
    %v1502 = vmul.f32 %v1500, %v1308
    %v1503 = vsub.f32 %v1493, %v1501
    %v1504 = vsub.f32 %v1494, %v1502
    %v1505 = vmul.f32 %v1503, %v1503
    %v1506 = vmul.f32 %v1504, %v1504
    %v1507 = vsel %vm60, %v1505, 0.0
    %1508 = vadd.xlane.f32.xlu0 %v1507
    %v1509 = vpop.xlane.xlu0 %1508
    %v1510 = vsel %vm60, %v1506, 0.0
    %1511 = vadd.xlane.f32.xlu0 %v1510
    %v1512 = vpop.xlane.xlu0 %1511
    %v1513 = vmul.f32 %v1509, %v1308
    %v1514 = vmul.f32 %v1512, %v1308
    %v1515 = vadd.f32 %v1513, 1e-05
    %v1516 = vadd.f32 %v1514, 1e-05
    %v1517 = vrsqrt.pop %v1515
    %v1518 = vrsqrt.pop %v1516
    %v1519 = vmul.f32 %v1503, %v1517
    %v1520 = vmul.f32 %v1504, %v1518
    %v1521 = vld [vmem:[%s3 + $0x8] sm:$0x1]
    %v1522 = vlaneseq
    %v1523 = vshrl.u32 %v1522, 7
    %v1524 = vsub.s32 0, %v1523
    %v1525 = vrot.slane %v1521, %v1524
    %v1526 = vmul.f32 %v1519, %v1525
    %v1527 = vmul.f32 %v1520, %v1525
    %v1528 = vld [vmem:[%s3 + $0x9] sm:$0x1]
    %v1529 = vlaneseq
    %v1530 = vshrl.u32 %v1529, 7
    %v1531 = vsub.s32 0, %v1530
    %v1532 = vrot.slane %v1528, %v1531
    %v1533 = vadd.f32 %v1526, %v1532
    %v1534 = vadd.f32 %v1527, %v1532
    %1535 = vst.msk [vmem:[#allocation3] sm:$0xff] %vm60, %v1533
    %1536 = vst.msk [vmem:[#allocation3 + $0x8] sm:$0xff] %vm60, %v1534
    // Predicated region
    $region18: #{tpu_custom_call.1} parent=1 // pred_check
      _
    $region19: #{tpu_custom_call.1} parent=1 // pred_check_branch
      %1538 = sbr.rel (0) target = $region21
    $region20: #{tpu_custom_call.1} parent=1 // pred_region
      %s1540 = ssub.s32 256, 256
      %1541 = vsyncadd [#allocation4], %s1540
      %s1542 = sshll.u32 [#allocation3], 4
      %s1543 = int_to_ptr.vmem [resolvable:$true] %s1542
      %1548 = dma.vmem_to_hbm [thread:$0]  %s1543, 256, %s4, [#allocation4], 128, 128, 8
    $region21: #{tpu_custom_call.1} parent=1 // pred_fallthru
      _
    // Predicated region
    $region22: #{tpu_custom_call.1} parent=1 // pred_check
      _
    $region23: #{tpu_custom_call.1} parent=1 // pred_check_branch
      %1550 = sbr.rel (0) target = $region25
    $region24: #{tpu_custom_call.1} parent=1 // pred_region
      %1551 = dma.done [#allocation4], 256
    $region25: #{tpu_custom_call.1} parent=1 // pred_fallthru
      _
    %1552 = vsyncpa [#allocation4], 1

</llo_original>
